<compile_context>
chip_gen: v6e
topology: v6e:2x2x1
jax: 0.10.0
libtpu: 0.0.40
codegen_flags: <defaults>
</compile_context>

<pallas_src>
from functools import partial

import jax
import jax.numpy as jnp
from jax.experimental import pallas as pl
from jax.experimental.pallas import tpu as pltpu


def generator_kernel(x_ref, w_ref, b_ref, o_ref, *, acts_dtype=jnp.float32):
    """One batch tile of the full 6-layer (5 after fusion) Generator MLP.

    x_ref : (Bt, D)      batch-major input block
    w_ref : (L, P, P)    stacked, zero-padded W^T per layer (P = 2*D)
    b_ref : (L, P, 1)    stacked, zero-padded biases per layer
    o_ref : (Bt, D)      batch-major output block
    """
    Bt, D = x_ref.shape
    L, P, _ = w_ref.shape

    # Batch-on-lanes layout: (D, Bt), padded with zero feature rows up to P so the
    # whole chain is a uniform (P, P) @ (P, Bt).  Transpose lands on the XLU.
    h = jnp.transpose(x_ref[...])                                   # (D, Bt)
    if P > D:
        h = jnp.concatenate(
            [h, jnp.zeros((P - D, Bt), jnp.float32)], axis=0)       # (P, Bt)

    # 5 fused layers: first 4 have LeakyReLU(0.2); the last (L5∘L6) is plain linear.
    for l in range(L):
        w = w_ref[l].astype(acts_dtype)                             # (P, P)
        b = b_ref[l]                                                # (P, 1)
        h = jnp.dot(w, h.astype(acts_dtype),
                    preferred_element_type=jnp.float32) + b         # (P, Bt)
        if l < L - 1:
            h = jnp.where(h > 0, h, 0.2 * h)                        # LeakyReLU(0.2)

    # Only the first D feature rows are valid; transpose back to batch-major.
    o_ref[...] = jnp.transpose(h[:D, :]).astype(o_ref.dtype)        # (Bt, D)


def _pack_params(params):
    """Fuse the last two Linear layers and stack everything into 2 padded arrays.

    params: list of 6 (W (in, out), b (1, out)) pairs (JAX layout; y = x @ W + b).
    Returns (w_stack (L, P, P) f32, b_stack (L, P, 1) f32) with L = 5, P = 2*D,
    where w_stack[l, :out, :in] = W_l^T so each layer is  h <- W^T @ h + b.
    """
    (w5, b5), (w6, b6) = params[4], params[5]
    w56 = w5 @ w6                        # (D, D)
    b56 = b5 @ w6 + b6                   # (1, D)
    fused = list(params[:4]) + [(w56, b56)]

    P = max(max(w.shape) for (w, _) in fused)     # = 2 * D for this architecture
    L = len(fused)
    w_stack = jnp.zeros((L, P, P), jnp.float32)
    b_stack = jnp.zeros((L, P, 1), jnp.float32)
    for l, (w, b) in enumerate(fused):
        fan_in, fan_out = w.shape
        w_stack = w_stack.at[l, :fan_out, :fan_in].set(jnp.asarray(w, jnp.float32).T)
        b_stack = b_stack.at[l, :fan_out, 0].set(jnp.asarray(b, jnp.float32).reshape(-1))
    return w_stack, b_stack


def _pick_block_cols(batch, requested):
    """Largest multiple of 128 dividing `batch`, <= requested, preferring >=2 grid
    steps (so v7x can shard the parallel batch axis across its 2 TensorCores)."""
    limit = min(requested, batch)
    candidates = [c for c in range(128, limit + 1, 128) if batch % c == 0]
    if not candidates:
        return batch                     # odd/tiny batch: single (masked) block
    multi_step = [c for c in candidates if batch // c >= 2]
    return max(multi_step) if multi_step else max(candidates)


def generator_forward(x, params, *, block_cols=4096, use_bf16=False):
    """x: (B, D) float32.  params: list of 6 (W (in, out), b (1, out)) pairs.

    Returns (B, D) float32, matching Generator.forward in eval mode.
    """
    B, D = x.shape
    w_stack, b_stack = _pack_params(params)
    L, P, _ = w_stack.shape

    bc = _pick_block_cols(B, block_cols)
    assert B % bc == 0
    grid = (B // bc,)

    # Rough VMEM estimate; only override the scoped default when we'd exceed it
    # (relevant on v5e's 16 MiB default with very wide batch tiles).
    est = 4 * (bc * D * 4)                          # in + out blocks, double-buffered
    est += 2 * L * (P * P + P) * 4                  # stacked weights + biases, dbl-buf
    est += 6 * (bc * P * 4)                         # live activation slabs headroom
    cp_kwargs = dict(dimension_semantics=("parallel",))
    if est > 12 * 1024 * 1024:
        cp_kwargs["vmem_limit_bytes"] = int(min(2 * est, 60 * 1024 * 1024))

    kernel = partial(
        generator_kernel,
        acts_dtype=jnp.bfloat16 if use_bf16 else jnp.float32,
    )

    return pl.pallas_call(
        kernel,
        out_shape=jax.ShapeDtypeStruct((B, D), jnp.float32),
        grid_spec=pltpu.PrefetchScalarGridSpec(
            num_scalar_prefetch=0,
            grid=grid,
            in_specs=[
                pl.BlockSpec((bc, D), lambda i: (i, 0)),        # x, tiled over batch
                pl.BlockSpec((L, P, P), lambda i: (0, 0, 0)),   # stacked weights
                pl.BlockSpec((L, P, 1), lambda i: (0, 0, 0)),   # stacked biases
            ],
            out_specs=pl.BlockSpec((bc, D), lambda i: (i, 0)),
        ),
        compiler_params=pltpu.CompilerParams(**cp_kwargs),
    )(x, w_stack, b_stack)


def init_generator_params(key, input_dim):
    """Deterministic init mirroring nn.Linear default (uniform +-1/sqrt(fan_in))."""
    D = input_dim
    layer_dims = [
        (D, 2 * D),
        (2 * D, D),
        (D, D // 2),
        (D // 2, D),
        (D, D),
        (D, D),
    ]
    params = []
    for (fan_in, fan_out) in layer_dims:
        key, kw, kb = jax.random.split(key, 3)
        bound = 1.0 / jnp.sqrt(jnp.float32(fan_in))
        w = jax.random.uniform(
            kw, (fan_in, fan_out), dtype=jnp.float32, minval=-bound, maxval=bound
        )
        b = jax.random.uniform(
            kb, (1, fan_out), dtype=jnp.float32, minval=-bound, maxval=bound
        )
        params.append((w, b))
    return params


def generator_forward_ref(x, params):
    """Pure-JAX reference (unfused, batch-major) for correctness checking."""
    h = x
    for idx, (w, b) in enumerate(params):
        h = h @ w + b
        if idx < 4:  # first 4 layers have LeakyReLU(0.2); last 2 are plain Linear
            h = jnp.where(h > 0, h, 0.2 * h)
    return h


if __name__ == "__main__":
    key = jax.random.PRNGKey(0)
    k_params, k_x = jax.random.split(key)

    B = 1024        # batch of entity embeddings (two 512-wide lane-dense tiles)
    D = 32          # embed_dim (input_dim)

    params = init_generator_params(k_params, D)
    x = jax.random.normal(k_x, (B, D), dtype=jnp.float32)

    out = generator_forward(x, params)
    out = jax.block_until_ready(out)

    ref = generator_forward_ref(x, params)
    assert out.shape == (B, D)
    # Layer-5/6 fusion reassociates float ops; tolerance stays tight in f32.
    assert jnp.allclose(out, ref, atol=1e-4, rtol=1e-4), "mismatch vs reference"

    print("KERNEL_OK")
</pallas_src>

<mosaic_0001>
module attributes {stable_mosaic.version = 11 : i64} {
  func.func @generator_kernel(%arg0: i32, %arg1: memref<512x32xf32, #tpu.memory_space<vmem>>, %arg2: memref<5x64x64xf32, #tpu.memory_space<vmem>>, %arg3: memref<5x64x1xf32, #tpu.memory_space<vmem>>, %arg4: memref<512x32xf32, #tpu.memory_space<vmem>>) attributes {dimension_semantics = [#tpu.dimension_semantics<parallel>], iteration_bounds = array<i64: 2>, scalar_prefetch = 0 : i64, scratch_operands = 0 : i64, tpu.core_type = #tpu.core_type<tc>, window_params = [{transform_indices = @transform_0, window_bounds = array<i64: 512, 32>}, {pipeline_mode = #tpu.pipeline_mode<synchronous>, transform_indices = @transform_1, window_bounds = array<i64: 5, 64, 64>}, {pipeline_mode = #tpu.pipeline_mode<synchronous>, transform_indices = @transform_2, window_bounds = array<i64: 5, 64, 1>}, {transform_indices = @transform_3, window_bounds = array<i64: 512, 32>}]} {
    %c0 = arith.constant 0 : index
    %c0_0 = arith.constant 0 : index
    %0 = vector.load %arg1[%c0, %c0_0] : memref<512x32xf32, #tpu.memory_space<vmem>>, vector<512x32xf32>
    %1 = tpu.transpose %0, [1, 0] : vector<512x32xf32> -> vector<32x512xf32>
    %cst = arith.constant 0.000000e+00 : f32
    %2 = vector.broadcast %cst : f32 to vector<32x512xf32>
    %3 = tpu.concatenate %1, %2 in 0 : vector<32x512xf32>, vector<32x512xf32> -> vector<64x512xf32>
    %c0_1 = arith.constant 0 : index
    %c0_2 = arith.constant 0 : index
    %c0_3 = arith.constant 0 : index
    %4 = vector.load %arg2[%c0_1, %c0_2, %c0_3] : memref<5x64x64xf32, #tpu.memory_space<vmem>>, vector<1x64x64xf32>
    %5 = vector.shape_cast %4 : vector<1x64x64xf32> to vector<64x64xf32>
    %c0_4 = arith.constant 0 : index
    %c0_5 = arith.constant 0 : index
    %c0_6 = arith.constant 0 : index
    %6 = vector.load %arg3[%c0_4, %c0_5, %c0_6] : memref<5x64x1xf32, #tpu.memory_space<vmem>>, vector<1x64x1xf32>
    %7 = vector.shape_cast %6 : vector<1x64x1xf32> to vector<64x1xf32>
    %cst_7 = arith.constant dense<0.000000e+00> : vector<64x512xf32>
    %8 = tpu.matmul %5, %3, %cst_7 {dimension_numbers = #tpu.dot_dimension_numbers<[1], [0], [0], [1], [0, 0, 1, 1], [], []>} : vector<64x64xf32>, vector<64x512xf32>, vector<64x512xf32> -> vector<64x512xf32>
    %9 = vector.broadcast %7 : vector<64x1xf32> to vector<64x512xf32>
    %10 = arith.addf %8, %9 : vector<64x512xf32>
    %cst_8 = arith.constant 0.000000e+00 : f32
    %11 = vector.broadcast %cst_8 : f32 to vector<64x512xf32>
    %12 = arith.cmpf ogt, %10, %11 : vector<64x512xf32>
    %cst_9 = arith.constant 2.000000e-01 : f32
    %13 = vector.broadcast %cst_9 : f32 to vector<64x512xf32>
    %14 = arith.mulf %13, %10 : vector<64x512xf32>
    %15 = arith.select %12, %10, %14 : vector<64x512xi1>, vector<64x512xf32>
    %c1 = arith.constant 1 : index
    %c0_10 = arith.constant 0 : index
    %c0_11 = arith.constant 0 : index
    %16 = vector.load %arg2[%c1, %c0_10, %c0_11] : memref<5x64x64xf32, #tpu.memory_space<vmem>>, vector<1x64x64xf32>
    %17 = vector.shape_cast %16 : vector<1x64x64xf32> to vector<64x64xf32>
    %c1_12 = arith.constant 1 : index
    %c0_13 = arith.constant 0 : index
    %c0_14 = arith.constant 0 : index
    %18 = vector.load %arg3[%c1_12, %c0_13, %c0_14] : memref<5x64x1xf32, #tpu.memory_space<vmem>>, vector<1x64x1xf32>
    %19 = vector.shape_cast %18 : vector<1x64x1xf32> to vector<64x1xf32>
    %cst_15 = arith.constant dense<0.000000e+00> : vector<64x512xf32>
    %20 = tpu.matmul %17, %15, %cst_15 {dimension_numbers = #tpu.dot_dimension_numbers<[1], [0], [0], [1], [0, 0, 1, 1], [], []>} : vector<64x64xf32>, vector<64x512xf32>, vector<64x512xf32> -> vector<64x512xf32>
    %21 = vector.broadcast %19 : vector<64x1xf32> to vector<64x512xf32>
    %22 = arith.addf %20, %21 : vector<64x512xf32>
    %cst_16 = arith.constant 0.000000e+00 : f32
    %23 = vector.broadcast %cst_16 : f32 to vector<64x512xf32>
    %24 = arith.cmpf ogt, %22, %23 : vector<64x512xf32>
    %cst_17 = arith.constant 2.000000e-01 : f32
    %25 = vector.broadcast %cst_17 : f32 to vector<64x512xf32>
    %26 = arith.mulf %25, %22 : vector<64x512xf32>
    %27 = arith.select %24, %22, %26 : vector<64x512xi1>, vector<64x512xf32>
    %c2 = arith.constant 2 : index
    %c0_18 = arith.constant 0 : index
    %c0_19 = arith.constant 0 : index
    %28 = vector.load %arg2[%c2, %c0_18, %c0_19] : memref<5x64x64xf32, #tpu.memory_space<vmem>>, vector<1x64x64xf32>
    %29 = vector.shape_cast %28 : vector<1x64x64xf32> to vector<64x64xf32>
    %c2_20 = arith.constant 2 : index
    %c0_21 = arith.constant 0 : index
    %c0_22 = arith.constant 0 : index
    %30 = vector.load %arg3[%c2_20, %c0_21, %c0_22] : memref<5x64x1xf32, #tpu.memory_space<vmem>>, vector<1x64x1xf32>
    %31 = vector.shape_cast %30 : vector<1x64x1xf32> to vector<64x1xf32>
    %cst_23 = arith.constant dense<0.000000e+00> : vector<64x512xf32>
    %32 = tpu.matmul %29, %27, %cst_23 {dimension_numbers = #tpu.dot_dimension_numbers<[1], [0], [0], [1], [0, 0, 1, 1], [], []>} : vector<64x64xf32>, vector<64x512xf32>, vector<64x512xf32> -> vector<64x512xf32>
    %33 = vector.broadcast %31 : vector<64x1xf32> to vector<64x512xf32>
    %34 = arith.addf %32, %33 : vector<64x512xf32>
    %cst_24 = arith.constant 0.000000e+00 : f32
    %35 = vector.broadcast %cst_24 : f32 to vector<64x512xf32>
    %36 = arith.cmpf ogt, %34, %35 : vector<64x512xf32>
    %cst_25 = arith.constant 2.000000e-01 : f32
    %37 = vector.broadcast %cst_25 : f32 to vector<64x512xf32>
    %38 = arith.mulf %37, %34 : vector<64x512xf32>
    %39 = arith.select %36, %34, %38 : vector<64x512xi1>, vector<64x512xf32>
    %c3 = arith.constant 3 : index
    %c0_26 = arith.constant 0 : index
    %c0_27 = arith.constant 0 : index
    %40 = vector.load %arg2[%c3, %c0_26, %c0_27] : memref<5x64x64xf32, #tpu.memory_space<vmem>>, vector<1x64x64xf32>
    %41 = vector.shape_cast %40 : vector<1x64x64xf32> to vector<64x64xf32>
    %c3_28 = arith.constant 3 : index
    %c0_29 = arith.constant 0 : index
    %c0_30 = arith.constant 0 : index
    %42 = vector.load %arg3[%c3_28, %c0_29, %c0_30] : memref<5x64x1xf32, #tpu.memory_space<vmem>>, vector<1x64x1xf32>
    %43 = vector.shape_cast %42 : vector<1x64x1xf32> to vector<64x1xf32>
    %cst_31 = arith.constant dense<0.000000e+00> : vector<64x512xf32>
    %44 = tpu.matmul %41, %39, %cst_31 {dimension_numbers = #tpu.dot_dimension_numbers<[1], [0], [0], [1], [0, 0, 1, 1], [], []>} : vector<64x64xf32>, vector<64x512xf32>, vector<64x512xf32> -> vector<64x512xf32>
    %45 = vector.broadcast %43 : vector<64x1xf32> to vector<64x512xf32>
    %46 = arith.addf %44, %45 : vector<64x512xf32>
    %cst_32 = arith.constant 0.000000e+00 : f32
    %47 = vector.broadcast %cst_32 : f32 to vector<64x512xf32>
    %48 = arith.cmpf ogt, %46, %47 : vector<64x512xf32>
    %cst_33 = arith.constant 2.000000e-01 : f32
    %49 = vector.broadcast %cst_33 : f32 to vector<64x512xf32>
    %50 = arith.mulf %49, %46 : vector<64x512xf32>
    %51 = arith.select %48, %46, %50 : vector<64x512xi1>, vector<64x512xf32>
    %c4 = arith.constant 4 : index
    %c0_34 = arith.constant 0 : index
    %c0_35 = arith.constant 0 : index
    %52 = vector.load %arg2[%c4, %c0_34, %c0_35] : memref<5x64x64xf32, #tpu.memory_space<vmem>>, vector<1x64x64xf32>
    %53 = vector.shape_cast %52 : vector<1x64x64xf32> to vector<64x64xf32>
    %c4_36 = arith.constant 4 : index
    %c0_37 = arith.constant 0 : index
    %c0_38 = arith.constant 0 : index
    %54 = vector.load %arg3[%c4_36, %c0_37, %c0_38] : memref<5x64x1xf32, #tpu.memory_space<vmem>>, vector<1x64x1xf32>
    %55 = vector.shape_cast %54 : vector<1x64x1xf32> to vector<64x1xf32>
    %cst_39 = arith.constant dense<0.000000e+00> : vector<64x512xf32>
    %56 = tpu.matmul %53, %51, %cst_39 {dimension_numbers = #tpu.dot_dimension_numbers<[1], [0], [0], [1], [0, 0, 1, 1], [], []>} : vector<64x64xf32>, vector<64x512xf32>, vector<64x512xf32> -> vector<64x512xf32>
    %57 = vector.broadcast %55 : vector<64x1xf32> to vector<64x512xf32>
    %58 = arith.addf %56, %57 : vector<64x512xf32>
    %59 = vector.extract_strided_slice %58 {offsets = [0, 0], sizes = [32, 512], strides = [1, 1]} : vector<64x512xf32> to vector<32x512xf32>
    %60 = tpu.transpose %59, [1, 0] : vector<32x512xf32> -> vector<512x32xf32>
    %c0_40 = arith.constant 0 : index
    %c0_41 = arith.constant 0 : index
    %61 = vector.load %arg4[%c0_40, %c0_41] : memref<512x32xf32, #tpu.memory_space<vmem>>, vector<512x32xf32>
    tpu.vector_store %arg4[%c0_40, %c0_41], %60 {strides = array<i32>} : memref<512x32xf32, #tpu.memory_space<vmem>>, vector<512x32xf32>,
    return
  }
  func.func @transform_0(%arg0: i32) -> (i32, i32) {
    %c0_i32 = arith.constant 0 : i32
    %c0_i32_0 = arith.constant 0 : i32
    return %arg0, %c0_i32 : i32, i32
  }
  func.func @transform_1(%arg0: i32) -> (i32, i32, i32) {
    %c0_i32 = arith.constant 0 : i32
    %c0_i32_0 = arith.constant 0 : i32
    %c0_i32_1 = arith.constant 0 : i32
    %c0_i32_2 = arith.constant 0 : i32
    return %c0_i32, %c0_i32_0, %c0_i32_1 : i32, i32, i32
  }
  func.func @transform_2(%arg0: i32) -> (i32, i32, i32) {
    %c0_i32 = arith.constant 0 : i32
    %c0_i32_0 = arith.constant 0 : i32
    %c0_i32_1 = arith.constant 0 : i32
    %c0_i32_2 = arith.constant 0 : i32
    return %c0_i32, %c0_i32_0, %c0_i32_1 : i32, i32, i32
  }
  func.func @transform_3(%arg0: i32) -> (i32, i32) {
    %c0_i32 = arith.constant 0 : i32
    %c0_i32_0 = arith.constant 0 : i32
    return %arg0, %c0_i32 : i32, i32
  }
}

</mosaic_0001>

<llo_original>
// kernel: tpu_custom_call.1
$region0: #{tpu_custom_call.1}
  #allocation0 [shape = 'u32[]', space=smem, size = 0x4, offset = 0x4, fixed_abs, tag = 'smem constant byte address 0x4 - core index']
  #allocation1 [shape = 'u32[144,128]{1,0:T(1,128)}', space=vmem, size = 0x12000, scoped, tag = 'internal scratch']
  %s0 = inlined_call_operand.vmem [shape: f32[1024,32], index: 0, kind: input, shape index: {}]
  %s1 = inlined_call_operand.vmem [shape: f32[5,64,64], index: 1, kind: input, shape index: {}]
  %s2 = inlined_call_operand.vmem [shape: f32[5,64,1], index: 2, kind: input, shape index: {}]
  %s3 = inlined_call_operand.vmem [shape: f32[1024,32], index: 3, kind: output, shape index: {}]
  %s4 = sld [smem:[#allocation0]]
  $region45: #{tpu_custom_call.1} parent=0
    _
  %s6 = ssub.s32 1, %s4
  %s7 = scalar_select 0, %s6, %s4
  loop: start=0, step=1, limit=4
  $region2: #{tpu_custom_call.1} parent=0 // loop_pre_header
    _
  $region3: #{tpu_custom_call.1} parent=0 // loop_header
    %s9 = sphi 0, %s13
    %p10 = scmp.ge.s32.totalorder %s9, 4
    %s19 = sphi 0, %s21
    %s22 = sphi 0, %s19
    %s23 = sphi 0, %s22
    %s39 = sphi 0, %s23
    %s43 = sphi 0, %s43
    %s45 = sphi 0, %s43
    %s46 = sphi 0, %s45
    %s60 = sphi 0, %s46
    %s64 = sphi 0, %s64
    %s66 = sphi 0, %s64
    %s67 = sphi 0, %s66
    %s81 = sphi 0, %s67
    %s87 = sphi 0, %s89
    %s90 = sphi 0, %s87
    %s91 = sphi 0, %s90
    %s107 = sphi 0, %s91
  $region4: #{tpu_custom_call.1} parent=0 // loop_header_branch
    %12 = sbr.rel (%p10) target = $region8
  $region5: #{tpu_custom_call.1} parent=0 // loop_body
    %s14 = ssub.s32 %s9, 1
    %s15 = ssub.s32 %s9, 2
    %s16 = sadd.s32 %s9, 1
    %s17 = ssub.s32 %s9, %s16
    %p18 = scmp.eq.s32.totalorder %s17, 0
    %s20 = sadd.s32 %s19, 1
    %s21 = scalar_select %p18, %s19, %s20
    %p24 = pneg %p18
    %p25 = scmp.eq.s32.totalorder %s9, 1
    %p26 = por %p24, %p25
    %p27 = scmp.ne.s32.totalorder %s19, %s22
    %p28 = scmp.eq.s32.totalorder %s9, 0
    %p29 = por %p27, %p28
    %p30 = scmp.ne.s32.totalorder %s19, %s22
    %p31 = scmp.eq.s32.totalorder %s14, 1
    %p32 = por %p30, %p31
    %p33 = scmp.ne.s32.totalorder %s22, %s23
    %p34 = scmp.eq.s32.totalorder %s14, 0
    %p35 = por %p33, %p34
    %p36 = scmp.ne.s32.totalorder %s22, %s23
    %p37 = scmp.eq.s32.totalorder %s15, 1
    %p38 = por %p36, %p37
    %p40 = scmp.ne.s32.totalorder %s23, %s39
    %p41 = scmp.eq.s32.totalorder %s15, 0
    %p42 = por %p40, %p41
    %s44 = sadd.s32 %s43, 1
    %p47 = scmp.eq.s32.totalorder %s9, 1
    %p48 = scmp.ne.s32.totalorder %s43, %s45
    %p49 = scmp.eq.s32.totalorder %s9, 0
    %p50 = por %p48, %p49
    %p51 = scmp.ne.s32.totalorder %s43, %s45
    %p52 = scmp.eq.s32.totalorder %s14, 1
    %p53 = por %p51, %p52
    %p54 = scmp.ne.s32.totalorder %s45, %s46
    %p55 = scmp.eq.s32.totalorder %s14, 0
    %p56 = por %p54, %p55
    %p57 = scmp.ne.s32.totalorder %s45, %s46
    %p58 = scmp.eq.s32.totalorder %s15, 1
    %p59 = por %p57, %p58
    %p61 = scmp.ne.s32.totalorder %s46, %s60
    %p62 = scmp.eq.s32.totalorder %s15, 0
    %p63 = por %p61, %p62
    %s65 = sadd.s32 %s64, 1
    %p68 = scmp.eq.s32.totalorder %s9, 1
    %p69 = scmp.ne.s32.totalorder %s64, %s66
    %p70 = scmp.eq.s32.totalorder %s9, 0
    %p71 = por %p69, %p70
    %p72 = scmp.ne.s32.totalorder %s64, %s66
    %p73 = scmp.eq.s32.totalorder %s14, 1
    %p74 = por %p72, %p73
    %p75 = scmp.ne.s32.totalorder %s66, %s67
    %p76 = scmp.eq.s32.totalorder %s14, 0
    %p77 = por %p75, %p76
    %p78 = scmp.ne.s32.totalorder %s66, %s67
    %p79 = scmp.eq.s32.totalorder %s15, 1
    %p80 = por %p78, %p79
    %p82 = scmp.ne.s32.totalorder %s67, %s81
    %p83 = scmp.eq.s32.totalorder %s15, 0
    %p84 = por %p82, %p83
    %s85 = ssub.s32 %s9, %s16
    %p86 = scmp.eq.s32.totalorder %s85, 0
    %s88 = sadd.s32 %s87, 1
    %s89 = scalar_select %p86, %s87, %s88
    %p92 = pneg %p86
    %p93 = scmp.eq.s32.totalorder %s9, 1
    %p94 = por %p92, %p93
    %p95 = scmp.ne.s32.totalorder %s87, %s90
    %p96 = scmp.eq.s32.totalorder %s9, 0
    %p97 = por %p95, %p96
    %p98 = scmp.ne.s32.totalorder %s87, %s90
    %p99 = scmp.eq.s32.totalorder %s14, 1
    %p100 = por %p98, %p99
    %p101 = scmp.ne.s32.totalorder %s90, %s91
    %p102 = scmp.eq.s32.totalorder %s14, 0
    %p103 = por %p101, %p102
    %p104 = scmp.ne.s32.totalorder %s90, %s91
    %p105 = scmp.eq.s32.totalorder %s15, 1
    %p106 = por %p104, %p105
    %p108 = scmp.ne.s32.totalorder %s91, %s107
    %p109 = scmp.eq.s32.totalorder %s15, 0
    %p110 = por %p108, %p109
    %p111 = scmp.le.s32.totalorder 1, %s9
    %p112 = scmp.lt.s32.totalorder %s9, 3
    %p113 = pnand %p111, %p112
    %p114 = pneg %p113
    // Predicated region
    $region9: #{tpu_custom_call.1} parent=5 // pred_check
      _
    $region10: #{tpu_custom_call.1} parent=5 // pred_check_branch
      %116 = sbr.rel (%p113) target = $region12
    $region11: #{tpu_custom_call.1} parent=5 // pred_region
      %s117 = ssub.s32 %s9, 1
      // Predicated region
      $region13: #{tpu_custom_call.1} parent=11 // pred_check
        %p118 = pneg %p56
      $region14: #{tpu_custom_call.1} parent=11 // pred_check_branch
        %120 = sbr.rel (%p118) target = $region16
      $region15: #{tpu_custom_call.1} parent=11 // pred_region
        _
      $region16: #{tpu_custom_call.1} parent=11 // pred_fallthru
        _
      // Predicated region
      $region17: #{tpu_custom_call.1} parent=11 // pred_check
        %p121 = pneg %p77
      $region18: #{tpu_custom_call.1} parent=11 // pred_check_branch
        %123 = sbr.rel (%p121) target = $region20
      $region19: #{tpu_custom_call.1} parent=11 // pred_region
        _
      $region20: #{tpu_custom_call.1} parent=11 // pred_fallthru
        _
    $region12: #{tpu_custom_call.1} parent=5 // pred_fallthru
      _
    %p124 = scmp.lt.s32.totalorder %s9, 2
    // Predicated region
    $region21: #{tpu_custom_call.1} parent=5 // pred_check
      %p125 = pneg %p124
    $region22: #{tpu_custom_call.1} parent=5 // pred_check_branch
      %127 = sbr.rel (%p125) target = $region24
    $region23: #{tpu_custom_call.1} parent=5 // pred_region
      // Predicated region
      $region25: #{tpu_custom_call.1} parent=23 // pred_check
        %p128 = pneg %p29
      $region26: #{tpu_custom_call.1} parent=23 // pred_check_branch
        %130 = sbr.rel (%p128) target = $region28
      $region27: #{tpu_custom_call.1} parent=23 // pred_region
        %s131 = smul.u32 64, %s9
        %p132 = scmp.lt.s32.totalorder %s131, 127
        %s133 = scalar_select %p132, %s131, 127
        %s134 = smul.addr %s133, 8
        %s135 = scalar_lea.vmem %s0, %s134
        %s136 = smul.u32 64, %s9
      $region28: #{tpu_custom_call.1} parent=23 // pred_fallthru
        _
    $region24: #{tpu_custom_call.1} parent=5 // pred_fallthru
      _
    %p137 = scmp.le.s32.totalorder 1, %s9
    %p138 = scmp.lt.s32.totalorder %s9, 3
    %p139 = pnand %p137, %p138
    %p140 = pneg %p139
    // Predicated region
    $region29: #{tpu_custom_call.1} parent=5 // pred_check
      _
    $region30: #{tpu_custom_call.1} parent=5 // pred_check_branch
      %142 = sbr.rel (%p139) target = $region32
    $region31: #{tpu_custom_call.1} parent=5 // pred_region
      %s143 = ssub.s32 %s9, 1
      %s144 = smul.u32 64, %s14
      %p145 = scmp.lt.s32.totalorder %s144, 127
      %s146 = scalar_select %p145, %s144, 127
      %s147 = smul.addr %s146, 8
      %s148 = scalar_lea.vmem %s0, %s147
      %p149 = pneg %p35
      %p150 = pneg %p32
      %p151 = pneg %p56
      %p152 = pneg %p53
      %p153 = pneg %p77
      %p154 = pneg %p74
      %p155 = pneg %p103
      %p156 = pneg %p100
      %s157 = smul.u32 64, %s14
      %p158 = scmp.lt.s32.totalorder %s157, 127
      %s159 = scalar_select %p158, %s157, 127
      %s160 = smul.addr %s159, 8
      %s161 = scalar_lea.vmem %s3, %s160
      %s162 = smul.u32 64, %s14
      %p163 = scmp.lt.s32.totalorder %s162, 127
      %s164 = scalar_select %p163, %s162, 127
      %s165 = smul.addr %s164, 8
      %s166 = scalar_lea.vmem %s0, %s165
      %s167 = smul.u32 64, %s14
      %s168 = smul.u32 64, %s14
      %p169 = scmp.lt.s32.totalorder %s168, 127
      %s170 = scalar_select %p169, %s168, 127
      %s171 = smul.addr %s170, 8
      %s172 = scalar_lea.vmem %s3, %s171
      %s173 = smul.u32 64, %s14
      %v174 = vld [vmem:[%s166] sm:$0xff]
      %v175 = vld [vmem:[%s166 + $0x8] sm:$0xff]
      %v176 = vld [vmem:[%s166 + $0x10] sm:$0xff]
      %v177 = vld [vmem:[%s166 + $0x18] sm:$0xff]
      %v178 = vld [vmem:[%s166 + $0x20] sm:$0xff]
      %v179 = vld [vmem:[%s166 + $0x28] sm:$0xff]
      %v180 = vld [vmem:[%s166 + $0x30] sm:$0xff]
      %v181 = vld [vmem:[%s166 + $0x38] sm:$0xff]
      %v182 = vld [vmem:[%s166 + $0x40] sm:$0xff]
      %v183 = vld [vmem:[%s166 + $0x48] sm:$0xff]
      %v184 = vld [vmem:[%s166 + $0x50] sm:$0xff]
      %v185 = vld [vmem:[%s166 + $0x58] sm:$0xff]
      %v186 = vld [vmem:[%s166 + $0x60] sm:$0xff]
      %v187 = vld [vmem:[%s166 + $0x68] sm:$0xff]
      %v188 = vld [vmem:[%s166 + $0x70] sm:$0xff]
      %v189 = vld [vmem:[%s166 + $0x78] sm:$0xff]
      %v190 = vld [vmem:[%s166 + $0x80] sm:$0xff]
      %v191 = vld [vmem:[%s166 + $0x88] sm:$0xff]
      %v192 = vld [vmem:[%s166 + $0x90] sm:$0xff]
      %v193 = vld [vmem:[%s166 + $0x98] sm:$0xff]
      %v194 = vld [vmem:[%s166 + $0xa0] sm:$0xff]
      %v195 = vld [vmem:[%s166 + $0xa8] sm:$0xff]
      %v196 = vld [vmem:[%s166 + $0xb0] sm:$0xff]
      %v197 = vld [vmem:[%s166 + $0xb8] sm:$0xff]
      %v198 = vld [vmem:[%s166 + $0xc0] sm:$0xff]
      %v199 = vld [vmem:[%s166 + $0xc8] sm:$0xff]
      %v200 = vld [vmem:[%s166 + $0xd0] sm:$0xff]
      %v201 = vld [vmem:[%s166 + $0xd8] sm:$0xff]
      %v202 = vld [vmem:[%s166 + $0xe0] sm:$0xff]
      %v203 = vld [vmem:[%s166 + $0xe8] sm:$0xff]
      %v204 = vld [vmem:[%s166 + $0xf0] sm:$0xff]
      %v205 = vld [vmem:[%s166 + $0xf8] sm:$0xff]
      %v206 = vld [vmem:[%s166 + $0x100] sm:$0xff]
      %v207 = vld [vmem:[%s166 + $0x108] sm:$0xff]
      %v208 = vld [vmem:[%s166 + $0x110] sm:$0xff]
      %v209 = vld [vmem:[%s166 + $0x118] sm:$0xff]
      %v210 = vld [vmem:[%s166 + $0x120] sm:$0xff]
      %v211 = vld [vmem:[%s166 + $0x128] sm:$0xff]
      %v212 = vld [vmem:[%s166 + $0x130] sm:$0xff]
      %v213 = vld [vmem:[%s166 + $0x138] sm:$0xff]
      %v214 = vld [vmem:[%s166 + $0x140] sm:$0xff]
      %v215 = vld [vmem:[%s166 + $0x148] sm:$0xff]
      %v216 = vld [vmem:[%s166 + $0x150] sm:$0xff]
      %v217 = vld [vmem:[%s166 + $0x158] sm:$0xff]
      %v218 = vld [vmem:[%s166 + $0x160] sm:$0xff]
      %v219 = vld [vmem:[%s166 + $0x168] sm:$0xff]
      %v220 = vld [vmem:[%s166 + $0x170] sm:$0xff]
      %v221 = vld [vmem:[%s166 + $0x178] sm:$0xff]
      %v222 = vld [vmem:[%s166 + $0x180] sm:$0xff]
      %v223 = vld [vmem:[%s166 + $0x188] sm:$0xff]
      %v224 = vld [vmem:[%s166 + $0x190] sm:$0xff]
      %v225 = vld [vmem:[%s166 + $0x198] sm:$0xff]
      %v226 = vld [vmem:[%s166 + $0x1a0] sm:$0xff]
      %v227 = vld [vmem:[%s166 + $0x1a8] sm:$0xff]
      %v228 = vld [vmem:[%s166 + $0x1b0] sm:$0xff]
      %v229 = vld [vmem:[%s166 + $0x1b8] sm:$0xff]
      %v230 = vld [vmem:[%s166 + $0x1c0] sm:$0xff]
      %v231 = vld [vmem:[%s166 + $0x1c8] sm:$0xff]
      %v232 = vld [vmem:[%s166 + $0x1d0] sm:$0xff]
      %v233 = vld [vmem:[%s166 + $0x1d8] sm:$0xff]
      %v234 = vld [vmem:[%s166 + $0x1e0] sm:$0xff]
      %v235 = vld [vmem:[%s166 + $0x1e8] sm:$0xff]
      %v236 = vld [vmem:[%s166 + $0x1f0] sm:$0xff]
      %v237 = vld [vmem:[%s166 + $0x1f8] sm:$0xff]
      %238 = vxpose.xlu0.b32.start [1/16] %v174, 128
      %239 = vxpose.xlu0.b32.cont [2/16] %v175, 128
      %240 = vxpose.xlu0.b32.cont [3/16] %v176, 128
      %241 = vxpose.xlu0.b32.cont [4/16] %v177, 128
      %242 = vxpose.xlu0.b32.cont [5/16] %v178, 128
      %243 = vxpose.xlu0.b32.cont [6/16] %v179, 128
      %244 = vxpose.xlu0.b32.cont [7/16] %v180, 128
      %245 = vxpose.xlu0.b32.cont [8/16] %v181, 128
      %246 = vxpose.xlu0.b32.cont [9/16] %v182, 128
      %247 = vxpose.xlu0.b32.cont [10/16] %v183, 128
      %248 = vxpose.xlu0.b32.cont [11/16] %v184, 128
      %249 = vxpose.xlu0.b32.cont [12/16] %v185, 128
      %250 = vxpose.xlu0.b32.cont [13/16] %v186, 128
      %251 = vxpose.xlu0.b32.cont [14/16] %v187, 128
      %252 = vxpose.xlu0.b32.cont [15/16] %v188, 128
      %253 = vxpose.xlu0.b32.end [16/16] %v189, 128
      %v254 = vpop.trf.xlu0
      %v255 = vpop.trf.xlu0
      %v256 = vpop.trf.xlu0
      %v257 = vpop.trf.xlu0
      %v258 = vpop.trf.xlu0
      %v259 = vpop.trf.xlu0
      %v260 = vpop.trf.xlu0
      %v261 = vpop.trf.xlu0
      %v262 = vpop.trf.xlu0
      %v263 = vpop.trf.xlu0
      %v264 = vpop.trf.xlu0
      %v265 = vpop.trf.xlu0
      %v266 = vpop.trf.xlu0
      %v267 = vpop.trf.xlu0
      %v268 = vpop.trf.xlu0
      %v269 = vpop.trf.xlu0
      %270 = vxpose.xlu0.b32.start [1/16] %v190, 128
      %271 = vxpose.xlu0.b32.cont [2/16] %v191, 128
      %272 = vxpose.xlu0.b32.cont [3/16] %v192, 128
      %273 = vxpose.xlu0.b32.cont [4/16] %v193, 128
      %274 = vxpose.xlu0.b32.cont [5/16] %v194, 128
      %275 = vxpose.xlu0.b32.cont [6/16] %v195, 128
      %276 = vxpose.xlu0.b32.cont [7/16] %v196, 128
      %277 = vxpose.xlu0.b32.cont [8/16] %v197, 128
      %278 = vxpose.xlu0.b32.cont [9/16] %v198, 128
      %279 = vxpose.xlu0.b32.cont [10/16] %v199, 128
      %280 = vxpose.xlu0.b32.cont [11/16] %v200, 128
      %281 = vxpose.xlu0.b32.cont [12/16] %v201, 128
      %282 = vxpose.xlu0.b32.cont [13/16] %v202, 128
      %283 = vxpose.xlu0.b32.cont [14/16] %v203, 128
      %284 = vxpose.xlu0.b32.cont [15/16] %v204, 128
      %285 = vxpose.xlu0.b32.end [16/16] %v205, 128
      %v286 = vpop.trf.xlu0
      %v287 = vpop.trf.xlu0
      %v288 = vpop.trf.xlu0
      %v289 = vpop.trf.xlu0
      %v290 = vpop.trf.xlu0
      %v291 = vpop.trf.xlu0
      %v292 = vpop.trf.xlu0
      %v293 = vpop.trf.xlu0
      %v294 = vpop.trf.xlu0
      %v295 = vpop.trf.xlu0
      %v296 = vpop.trf.xlu0
      %v297 = vpop.trf.xlu0
      %v298 = vpop.trf.xlu0
      %v299 = vpop.trf.xlu0
      %v300 = vpop.trf.xlu0
      %v301 = vpop.trf.xlu0
      %302 = vxpose.xlu0.b32.start [1/16] %v206, 128
      %303 = vxpose.xlu0.b32.cont [2/16] %v207, 128
      %304 = vxpose.xlu0.b32.cont [3/16] %v208, 128
      %305 = vxpose.xlu0.b32.cont [4/16] %v209, 128
      %306 = vxpose.xlu0.b32.cont [5/16] %v210, 128
      %307 = vxpose.xlu0.b32.cont [6/16] %v211, 128
      %308 = vxpose.xlu0.b32.cont [7/16] %v212, 128
      %309 = vxpose.xlu0.b32.cont [8/16] %v213, 128
      %310 = vxpose.xlu0.b32.cont [9/16] %v214, 128
      %311 = vxpose.xlu0.b32.cont [10/16] %v215, 128
      %312 = vxpose.xlu0.b32.cont [11/16] %v216, 128
      %313 = vxpose.xlu0.b32.cont [12/16] %v217, 128
      %314 = vxpose.xlu0.b32.cont [13/16] %v218, 128
      %315 = vxpose.xlu0.b32.cont [14/16] %v219, 128
      %316 = vxpose.xlu0.b32.cont [15/16] %v220, 128
      %317 = vxpose.xlu0.b32.end [16/16] %v221, 128
      %v318 = vpop.trf.xlu0
      %v319 = vpop.trf.xlu0
      %v320 = vpop.trf.xlu0
      %v321 = vpop.trf.xlu0
      %v322 = vpop.trf.xlu0
      %v323 = vpop.trf.xlu0
      %v324 = vpop.trf.xlu0
      %v325 = vpop.trf.xlu0
      %v326 = vpop.trf.xlu0
      %v327 = vpop.trf.xlu0
      %v328 = vpop.trf.xlu0
      %v329 = vpop.trf.xlu0
      %v330 = vpop.trf.xlu0
      %v331 = vpop.trf.xlu0
      %v332 = vpop.trf.xlu0
      %v333 = vpop.trf.xlu0
      %334 = vxpose.xlu0.b32.start [1/16] %v222, 128
      %335 = vxpose.xlu0.b32.cont [2/16] %v223, 128
      %336 = vxpose.xlu0.b32.cont [3/16] %v224, 128
      %337 = vxpose.xlu0.b32.cont [4/16] %v225, 128
      %338 = vxpose.xlu0.b32.cont [5/16] %v226, 128
      %339 = vxpose.xlu0.b32.cont [6/16] %v227, 128
      %340 = vxpose.xlu0.b32.cont [7/16] %v228, 128
      %341 = vxpose.xlu0.b32.cont [8/16] %v229, 128
      %342 = vxpose.xlu0.b32.cont [9/16] %v230, 128
      %343 = vxpose.xlu0.b32.cont [10/16] %v231, 128
      %344 = vxpose.xlu0.b32.cont [11/16] %v232, 128
      %345 = vxpose.xlu0.b32.cont [12/16] %v233, 128
      %346 = vxpose.xlu0.b32.cont [13/16] %v234, 128
      %347 = vxpose.xlu0.b32.cont [14/16] %v235, 128
      %348 = vxpose.xlu0.b32.cont [15/16] %v236, 128
      %349 = vxpose.xlu0.b32.end [16/16] %v237, 128
      %v350 = vpop.trf.xlu0
      %v351 = vpop.trf.xlu0
      %v352 = vpop.trf.xlu0
      %v353 = vpop.trf.xlu0
      %v354 = vpop.trf.xlu0
      %v355 = vpop.trf.xlu0
      %v356 = vpop.trf.xlu0
      %v357 = vpop.trf.xlu0
      %v358 = vpop.trf.xlu0
      %v359 = vpop.trf.xlu0
      %v360 = vpop.trf.xlu0
      %v361 = vpop.trf.xlu0
      %v362 = vpop.trf.xlu0
      %v363 = vpop.trf.xlu0
      %v364 = vpop.trf.xlu0
      %v365 = vpop.trf.xlu0
      %v366 = vld [vmem:[%s1] sm:$0xff]
      %v367 = vld [vmem:[%s1 + $0x8] sm:$0xff]
      %v368 = vld [vmem:[%s1 + $0x10] sm:$0xff]
      %v369 = vld [vmem:[%s1 + $0x18] sm:$0xff]
      %v370 = vld [vmem:[%s1 + $0x20] sm:$0xff]
      %v371 = vld [vmem:[%s1 + $0x28] sm:$0xff]
      %v372 = vld [vmem:[%s1 + $0x30] sm:$0xff]
      %v373 = vld [vmem:[%s1 + $0x38] sm:$0xff]
      %v374 = vld [vmem:[%s2] sm:$0xff]
      %v375 = vld [vmem:[%s2 + $0x8] sm:$0xff]
      %v376 = vld [vmem:[%s2 + $0x10] sm:$0xff]
      %v377 = vld [vmem:[%s2 + $0x18] sm:$0xff]
      %v378 = vld [vmem:[%s2 + $0x20] sm:$0xff]
      %v379 = vld [vmem:[%s2 + $0x28] sm:$0xff]
      %v380 = vld [vmem:[%s2 + $0x30] sm:$0xff]
      %v381 = vld [vmem:[%s2 + $0x38] sm:$0xff]
      %383 = vset.pattern.permute.xlu0 0
      %384 = vperm.xlu0 %383, %v374
      %v385 = vpop.permute.xlu0 %384
      %388 = vset.pattern.permute.xlu0 0
      %389 = vperm.xlu0 %388, %v375
      %v390 = vpop.permute.xlu0 %389
      %393 = vset.pattern.permute.xlu0 0
      %394 = vperm.xlu0 %393, %v376
      %v395 = vpop.permute.xlu0 %394
      %398 = vset.pattern.permute.xlu0 0
      %399 = vperm.xlu0 %398, %v377
      %v400 = vpop.permute.xlu0 %399
      %403 = vset.pattern.permute.xlu0 0
      %404 = vperm.xlu0 %403, %v378
      %v405 = vpop.permute.xlu0 %404
      %408 = vset.pattern.permute.xlu0 0
      %409 = vperm.xlu0 %408, %v379
      %v410 = vpop.permute.xlu0 %409
      %413 = vset.pattern.permute.xlu0 0
      %414 = vperm.xlu0 %413, %v380
      %v415 = vpop.permute.xlu0 %414
      %418 = vset.pattern.permute.xlu0 0
      %419 = vperm.xlu0 %418, %v381
      %v420 = vpop.permute.xlu0 %419
      %vm422 = vcmask 523264
      %v424 = vsel %vm422, %v366, 0
      %v427 = vsel %vm422, %v367, 0
      %v430 = vsel %vm422, %v368, 0
      %v433 = vsel %vm422, %v369, 0
      %v436 = vsel %vm422, %v370, 0
      %v439 = vsel %vm422, %v371, 0
      %v442 = vsel %vm422, %v372, 0
      %v445 = vsel %vm422, %v373, 0
      %447 = vmatprep.subr.mxu0 0.0
      %448 = vmatpush1.msra.mxu0 0.0
      %449 = vmatprep.subr.mxu0 0.0
      %450 = vmatpush1.msra.mxu0 0.0
      %451 = vmatprep.subr.mxu0 0.0
      %452 = vmatpush1.msra.mxu0 0.0
      %453 = vmatprep.subr.mxu0 0.0
      %454 = vmatpush1.msra.mxu0 0.0
      %455 = vmatprep.subr.mxu0 0.0
      %456 = vmatpush1.msra.mxu0 0.0
      %457 = vmatprep.subr.mxu0 0.0
      %458 = vmatpush1.msra.mxu0 0.0
      %459 = vmatprep.subr.mxu0 0.0
      %460 = vmatpush1.msra.mxu0 0.0
      %461 = vmatprep.subr.mxu0 0.0
      %462 = vmatpush1.msra.mxu0 0.0
      %463 = vmatprep.subr.mxu0 0.0
      %464 = vmatpush1.msra.mxu0 0.0
      %465 = vmatprep.subr.mxu0 0.0
      %466 = vmatpush1.msra.mxu0 0.0
      %467 = vmatprep.subr.mxu0 0.0
      %468 = vmatpush1.msra.mxu0 0.0
      %469 = vmatprep.subr.mxu0 0.0
      %470 = vmatpush1.msra.mxu0 0.0
      %471 = vmatprep.subr.mxu0 %v289
      %472 = vmatpush1.msra.mxu0 %v257
      %473 = vmatprep.subr.mxu0 %v288
      %474 = vmatpush1.msra.mxu0 %v256
      %475 = vmatprep.subr.mxu0 %v287
      %476 = vmatpush1.msra.mxu0 %v255
      %477 = vmatprep.subr.mxu0 %v286
      %478 = vmatpush1.msra.mxu0 %v254
      %479 = vmatprep.subr.mxu0 0.0
      %480 = vmatpush2.msra.mxu0 0.0
      %481 = vmatprep.subr.mxu0 0.0
      %482 = vmatpush2.msra.mxu0 0.0
      %483 = vmatprep.subr.mxu0 0.0
      %484 = vmatpush2.msra.mxu0 0.0
      %485 = vmatprep.subr.mxu0 0.0
      %486 = vmatpush2.msra.mxu0 0.0
      %487 = vmatprep.subr.mxu0 0.0
      %488 = vmatpush2.msra.mxu0 0.0
      %489 = vmatprep.subr.mxu0 0.0
      %490 = vmatpush2.msra.mxu0 0.0
      %491 = vmatprep.subr.mxu0 0.0
      %492 = vmatpush2.msra.mxu0 0.0
      %493 = vmatprep.subr.mxu0 0.0
      %494 = vmatpush2.msra.mxu0 0.0
      %495 = vmatprep.subr.mxu0 0.0
      %496 = vmatpush2.msra.mxu0 0.0
      %497 = vmatprep.subr.mxu0 0.0
      %498 = vmatpush2.msra.mxu0 0.0
      %499 = vmatprep.subr.mxu0 0.0
      %500 = vmatpush2.msra.mxu0 0.0
      %501 = vmatprep.subr.mxu0 0.0
      %502 = vmatpush2.msra.mxu0 0.0
      %503 = vmatprep.subr.mxu0 0.0
      %504 = vmatpush2.msra.mxu0 0.0
      %505 = vmatprep.subr.mxu0 0.0
      %506 = vmatpush2.msra.mxu0 0.0
      %507 = vmatprep.subr.mxu0 0.0
      %508 = vmatpush2.msra.mxu0 0.0
      %509 = vmatprep.subr.mxu0 0.0
      %510 = vmatpush2.msra.mxu0 0.0
      %511 = vmatprep.mubr.f32.mxu0 0.0
      %512 = vmatmul.mubr.f32.gmra.mxu0 %v424
      %v513 = vpop.f32.mrf.mxu0
      %v514 = vadd.f32 %v385, %v513
      %v515 = vpop.f32.mrf.mxu0
      %v516 = vadd.f32 %v385, %v515
      %517 = vmatprep.mubr.f32.mxu0 0.0
      %518 = vmatmul.mubr.f32.gmra.mxu0 %v427
      %v519 = vpop.f32.mrf.mxu0
      %v520 = vadd.f32 %v390, %v519
      %v521 = vpop.f32.mrf.mxu0
      %v522 = vadd.f32 %v390, %v521
      %523 = vmatprep.mubr.f32.mxu0 0.0
      %524 = vmatmul.mubr.f32.gmra.mxu0 %v430
      %v525 = vpop.f32.mrf.mxu0
      %v526 = vadd.f32 %v395, %v525
      %v527 = vpop.f32.mrf.mxu0
      %v528 = vadd.f32 %v395, %v527
      %529 = vmatprep.mubr.f32.mxu0 0.0
      %530 = vmatmul.mubr.f32.gmra.mxu0 %v433
      %v531 = vpop.f32.mrf.mxu0
      %v532 = vadd.f32 %v400, %v531
      %v533 = vpop.f32.mrf.mxu0
      %v534 = vadd.f32 %v400, %v533
      %535 = vmatprep.mubr.f32.mxu0 0.0
      %536 = vmatmul.mubr.f32.gmra.mxu0 %v436
      %v537 = vpop.f32.mrf.mxu0
      %v538 = vadd.f32 %v405, %v537
      %v539 = vpop.f32.mrf.mxu0
      %v540 = vadd.f32 %v405, %v539
      %541 = vmatprep.mubr.f32.mxu0 0.0
      %542 = vmatmul.mubr.f32.gmra.mxu0 %v439
      %v543 = vpop.f32.mrf.mxu0
      %v544 = vadd.f32 %v410, %v543
      %v545 = vpop.f32.mrf.mxu0
      %v546 = vadd.f32 %v410, %v545
      %547 = vmatprep.mubr.f32.mxu0 0.0
      %548 = vmatmul.mubr.f32.gmra.mxu0 %v442
      %v549 = vpop.f32.mrf.mxu0
      %v550 = vadd.f32 %v415, %v549
      %v551 = vpop.f32.mrf.mxu0
      %v552 = vadd.f32 %v415, %v551
      %553 = vmatprep.mubr.f32.mxu0 0.0
      %554 = vmatmul.mubr.f32.gmra.mxu0 %v445
      %v555 = vpop.f32.mrf.mxu0
      %v556 = vadd.f32 %v420, %v555
      %v557 = vpop.f32.mrf.mxu0
      %v558 = vadd.f32 %v420, %v557
      %559 = vdwg.mxu0
      %560 = vmatprep.subr.mxu0 0.0
      %561 = vmatpush1.msra.mxu0 0.0
      %562 = vmatprep.subr.mxu0 0.0
      %563 = vmatpush1.msra.mxu0 0.0
      %564 = vmatprep.subr.mxu0 0.0
      %565 = vmatpush1.msra.mxu0 0.0
      %566 = vmatprep.subr.mxu0 0.0
      %567 = vmatpush1.msra.mxu0 0.0
      %568 = vmatprep.subr.mxu0 0.0
      %569 = vmatpush1.msra.mxu0 0.0
      %570 = vmatprep.subr.mxu0 0.0
      %571 = vmatpush1.msra.mxu0 0.0
      %572 = vmatprep.subr.mxu0 0.0
      %573 = vmatpush1.msra.mxu0 0.0
      %574 = vmatprep.subr.mxu0 0.0
      %575 = vmatpush1.msra.mxu0 0.0
      %576 = vmatprep.subr.mxu0 0.0
      %577 = vmatpush1.msra.mxu0 0.0
      %578 = vmatprep.subr.mxu0 0.0
      %579 = vmatpush1.msra.mxu0 0.0
      %580 = vmatprep.subr.mxu0 0.0
      %581 = vmatpush1.msra.mxu0 0.0
      %582 = vmatprep.subr.mxu0 0.0
      %583 = vmatpush1.msra.mxu0 0.0
      %584 = vmatprep.subr.mxu0 %v353
      %585 = vmatpush1.msra.mxu0 %v321
      %586 = vmatprep.subr.mxu0 %v352
      %587 = vmatpush1.msra.mxu0 %v320
      %588 = vmatprep.subr.mxu0 %v351
      %589 = vmatpush1.msra.mxu0 %v319
      %590 = vmatprep.subr.mxu0 %v350
      %591 = vmatpush1.msra.mxu0 %v318
      %592 = vmatprep.subr.mxu0 0.0
      %593 = vmatpush2.msra.mxu0 0.0
      %594 = vmatprep.subr.mxu0 0.0
      %595 = vmatpush2.msra.mxu0 0.0
      %596 = vmatprep.subr.mxu0 0.0
      %597 = vmatpush2.msra.mxu0 0.0
      %598 = vmatprep.subr.mxu0 0.0
      %599 = vmatpush2.msra.mxu0 0.0
      %600 = vmatprep.subr.mxu0 0.0
      %601 = vmatpush2.msra.mxu0 0.0
      %602 = vmatprep.subr.mxu0 0.0
      %603 = vmatpush2.msra.mxu0 0.0
      %604 = vmatprep.subr.mxu0 0.0
      %605 = vmatpush2.msra.mxu0 0.0
      %606 = vmatprep.subr.mxu0 0.0
      %607 = vmatpush2.msra.mxu0 0.0
      %608 = vmatprep.subr.mxu0 0.0
      %609 = vmatpush2.msra.mxu0 0.0
      %610 = vmatprep.subr.mxu0 0.0
      %611 = vmatpush2.msra.mxu0 0.0
      %612 = vmatprep.subr.mxu0 0.0
      %613 = vmatpush2.msra.mxu0 0.0
      %614 = vmatprep.subr.mxu0 0.0
      %615 = vmatpush2.msra.mxu0 0.0
      %616 = vmatprep.subr.mxu0 0.0
      %617 = vmatpush2.msra.mxu0 0.0
      %618 = vmatprep.subr.mxu0 0.0
      %619 = vmatpush2.msra.mxu0 0.0
      %620 = vmatprep.subr.mxu0 0.0
      %621 = vmatpush2.msra.mxu0 0.0
      %622 = vmatprep.subr.mxu0 0.0
      %623 = vmatpush2.msra.mxu0 0.0
      %624 = vmatprep.mubr.f32.mxu0 0.0
      %625 = vmatmul.mubr.f32.gmra.mxu0 %v424
      %v626 = vpop.f32.mrf.mxu0
      %v627 = vadd.f32 %v385, %v626
      %v628 = vpop.f32.mrf.mxu0
      %v629 = vadd.f32 %v385, %v628
      %630 = vmatprep.mubr.f32.mxu0 0.0
      %631 = vmatmul.mubr.f32.gmra.mxu0 %v427
      %v632 = vpop.f32.mrf.mxu0
      %v633 = vadd.f32 %v390, %v632
      %v634 = vpop.f32.mrf.mxu0
      %v635 = vadd.f32 %v390, %v634
      %636 = vmatprep.mubr.f32.mxu0 0.0
      %637 = vmatmul.mubr.f32.gmra.mxu0 %v430
      %v638 = vpop.f32.mrf.mxu0
      %v639 = vadd.f32 %v395, %v638
      %v640 = vpop.f32.mrf.mxu0
      %v641 = vadd.f32 %v395, %v640
      %642 = vmatprep.mubr.f32.mxu0 0.0
      %643 = vmatmul.mubr.f32.gmra.mxu0 %v433
      %v644 = vpop.f32.mrf.mxu0
      %v645 = vadd.f32 %v400, %v644
      %v646 = vpop.f32.mrf.mxu0
      %v647 = vadd.f32 %v400, %v646
      %648 = vmatprep.mubr.f32.mxu0 0.0
      %649 = vmatmul.mubr.f32.gmra.mxu0 %v436
      %v650 = vpop.f32.mrf.mxu0
      %v651 = vadd.f32 %v405, %v650
      %v652 = vpop.f32.mrf.mxu0
      %v653 = vadd.f32 %v405, %v652
      %654 = vmatprep.mubr.f32.mxu0 0.0
      %655 = vmatmul.mubr.f32.gmra.mxu0 %v439
      %v656 = vpop.f32.mrf.mxu0
      %v657 = vadd.f32 %v410, %v656
      %v658 = vpop.f32.mrf.mxu0
      %v659 = vadd.f32 %v410, %v658
      %660 = vmatprep.mubr.f32.mxu0 0.0
      %661 = vmatmul.mubr.f32.gmra.mxu0 %v442
      %v662 = vpop.f32.mrf.mxu0
      %v663 = vadd.f32 %v415, %v662
      %v664 = vpop.f32.mrf.mxu0
      %v665 = vadd.f32 %v415, %v664
      %666 = vmatprep.mubr.f32.mxu0 0.0
      %667 = vmatmul.mubr.f32.gmra.mxu0 %v445
      %v668 = vpop.f32.mrf.mxu0
      %v669 = vadd.f32 %v420, %v668
      %v670 = vpop.f32.mrf.mxu0
      %v671 = vadd.f32 %v420, %v670
      %672 = vdwg.mxu0
      %vm673 = vcmp.gt.f32.partialorder %v514, 0.0
      %vm674 = vcmp.gt.f32.partialorder %v516, 0.0
      %vm675 = vcmp.gt.f32.partialorder %v627, 0.0
      %vm676 = vcmp.gt.f32.partialorder %v629, 0.0
      %vm677 = vcmp.gt.f32.partialorder %v520, 0.0
      %vm678 = vcmp.gt.f32.partialorder %v522, 0.0
      %vm679 = vcmp.gt.f32.partialorder %v633, 0.0
      %vm680 = vcmp.gt.f32.partialorder %v635, 0.0
      %vm681 = vcmp.gt.f32.partialorder %v526, 0.0
      %vm682 = vcmp.gt.f32.partialorder %v528, 0.0
      %vm683 = vcmp.gt.f32.partialorder %v639, 0.0
      %vm684 = vcmp.gt.f32.partialorder %v641, 0.0
      %vm685 = vcmp.gt.f32.partialorder %v532, 0.0
      %vm686 = vcmp.gt.f32.partialorder %v534, 0.0
      %vm687 = vcmp.gt.f32.partialorder %v645, 0.0
      %vm688 = vcmp.gt.f32.partialorder %v647, 0.0
      %vm689 = vcmp.gt.f32.partialorder %v538, 0.0
      %vm690 = vcmp.gt.f32.partialorder %v540, 0.0
      %vm691 = vcmp.gt.f32.partialorder %v651, 0.0
      %vm692 = vcmp.gt.f32.partialorder %v653, 0.0
      %vm693 = vcmp.gt.f32.partialorder %v544, 0.0
      %vm694 = vcmp.gt.f32.partialorder %v546, 0.0
      %vm695 = vcmp.gt.f32.partialorder %v657, 0.0
      %vm696 = vcmp.gt.f32.partialorder %v659, 0.0
      %vm697 = vcmp.gt.f32.partialorder %v550, 0.0
      %vm698 = vcmp.gt.f32.partialorder %v552, 0.0
      %vm699 = vcmp.gt.f32.partialorder %v663, 0.0
      %vm700 = vcmp.gt.f32.partialorder %v665, 0.0
      %vm701 = vcmp.gt.f32.partialorder %v556, 0.0
      %vm702 = vcmp.gt.f32.partialorder %v558, 0.0
      %vm703 = vcmp.gt.f32.partialorder %v669, 0.0
      %vm704 = vcmp.gt.f32.partialorder %v671, 0.0
      %v705 = vmul.f32 %v514, 0.2
      %v706 = vmul.f32 %v516, 0.2
      %v707 = vmul.f32 %v627, 0.2
      %v708 = vmul.f32 %v629, 0.2
      %v709 = vmul.f32 %v520, 0.2
      %v710 = vmul.f32 %v522, 0.2
      %v711 = vmul.f32 %v633, 0.2
      %v712 = vmul.f32 %v635, 0.2
      %v713 = vmul.f32 %v526, 0.2
      %v714 = vmul.f32 %v528, 0.2
      %v715 = vmul.f32 %v639, 0.2
      %v716 = vmul.f32 %v641, 0.2
      %v717 = vmul.f32 %v532, 0.2
      %v718 = vmul.f32 %v534, 0.2
      %v719 = vmul.f32 %v645, 0.2
      %v720 = vmul.f32 %v647, 0.2
      %v721 = vmul.f32 %v538, 0.2
      %v722 = vmul.f32 %v540, 0.2
      %v723 = vmul.f32 %v651, 0.2
      %v724 = vmul.f32 %v653, 0.2
      %v725 = vmul.f32 %v544, 0.2
      %v726 = vmul.f32 %v546, 0.2
      %v727 = vmul.f32 %v657, 0.2
      %v728 = vmul.f32 %v659, 0.2
      %v729 = vmul.f32 %v550, 0.2
      %v730 = vmul.f32 %v552, 0.2
      %v731 = vmul.f32 %v663, 0.2
      %v732 = vmul.f32 %v665, 0.2
      %v733 = vmul.f32 %v556, 0.2
      %v734 = vmul.f32 %v558, 0.2
      %v735 = vmul.f32 %v669, 0.2
      %v736 = vmul.f32 %v671, 0.2
      %v737 = vsel %vm673, %v514, %v705
      %v738 = vsel %vm674, %v516, %v706
      %v739 = vsel %vm675, %v627, %v707
      %v740 = vsel %vm676, %v629, %v708
      %v741 = vsel %vm677, %v520, %v709
      %v742 = vsel %vm678, %v522, %v710
      %v743 = vsel %vm679, %v633, %v711
      %v744 = vsel %vm680, %v635, %v712
      %v745 = vsel %vm681, %v526, %v713
      %v746 = vsel %vm682, %v528, %v714
      %v747 = vsel %vm683, %v639, %v715
      %v748 = vsel %vm684, %v641, %v716
      %v749 = vsel %vm685, %v532, %v717
      %v750 = vsel %vm686, %v534, %v718
      %v751 = vsel %vm687, %v645, %v719
      %v752 = vsel %vm688, %v647, %v720
      %v753 = vsel %vm689, %v538, %v721
      %v754 = vsel %vm690, %v540, %v722
      %v755 = vsel %vm691, %v651, %v723
      %v756 = vsel %vm692, %v653, %v724
      %v757 = vsel %vm693, %v544, %v725
      %v758 = vsel %vm694, %v546, %v726
      %v759 = vsel %vm695, %v657, %v727
      %v760 = vsel %vm696, %v659, %v728
      %v761 = vsel %vm697, %v550, %v729
      %v762 = vsel %vm698, %v552, %v730
      %v763 = vsel %vm699, %v663, %v731
      %v764 = vsel %vm700, %v665, %v732
      %v765 = vsel %vm701, %v556, %v733
      %v766 = vsel %vm702, %v558, %v734
      %v767 = vsel %vm703, %v669, %v735
      %v768 = vsel %vm704, %v671, %v736
      %s769 = scalar_lea.vmem %s1, 64
      %v770 = vld [vmem:[%s769] sm:$0xff]
      %v771 = vld [vmem:[%s769 + $0x8] sm:$0xff]
      %v772 = vld [vmem:[%s769 + $0x10] sm:$0xff]
      %v773 = vld [vmem:[%s769 + $0x18] sm:$0xff]
      %v774 = vld [vmem:[%s769 + $0x20] sm:$0xff]
      %v775 = vld [vmem:[%s769 + $0x28] sm:$0xff]
      %v776 = vld [vmem:[%s769 + $0x30] sm:$0xff]
      %v777 = vld [vmem:[%s769 + $0x38] sm:$0xff]
      %s778 = scalar_lea.vmem %s2, 64
      %v779 = vld [vmem:[%s778] sm:$0xff]
      %v780 = vld [vmem:[%s778 + $0x8] sm:$0xff]
      %v781 = vld [vmem:[%s778 + $0x10] sm:$0xff]
      %v782 = vld [vmem:[%s778 + $0x18] sm:$0xff]
      %v783 = vld [vmem:[%s778 + $0x20] sm:$0xff]
      %v784 = vld [vmem:[%s778 + $0x28] sm:$0xff]
      %v785 = vld [vmem:[%s778 + $0x30] sm:$0xff]
      %v786 = vld [vmem:[%s778 + $0x38] sm:$0xff]
      %788 = vset.pattern.permute.xlu0 0
      %789 = vperm.xlu0 %788, %v779
      %v790 = vpop.permute.xlu0 %789
      %793 = vset.pattern.permute.xlu0 0
      %794 = vperm.xlu0 %793, %v780
      %v795 = vpop.permute.xlu0 %794
      %798 = vset.pattern.permute.xlu0 0
      %799 = vperm.xlu0 %798, %v781
      %v800 = vpop.permute.xlu0 %799
      %803 = vset.pattern.permute.xlu0 0
      %804 = vperm.xlu0 %803, %v782
      %v805 = vpop.permute.xlu0 %804
      %808 = vset.pattern.permute.xlu0 0
      %809 = vperm.xlu0 %808, %v783
      %v810 = vpop.permute.xlu0 %809
      %813 = vset.pattern.permute.xlu0 0
      %814 = vperm.xlu0 %813, %v784
      %v815 = vpop.permute.xlu0 %814
      %818 = vset.pattern.permute.xlu0 0
      %819 = vperm.xlu0 %818, %v785
      %v820 = vpop.permute.xlu0 %819
      %823 = vset.pattern.permute.xlu0 0
      %824 = vperm.xlu0 %823, %v786
      %v825 = vpop.permute.xlu0 %824
      %v828 = vsel %vm422, %v770, 0
      %v831 = vsel %vm422, %v771, 0
      %v834 = vsel %vm422, %v772, 0
      %v837 = vsel %vm422, %v773, 0
      %v840 = vsel %vm422, %v774, 0
      %v843 = vsel %vm422, %v775, 0
      %v846 = vsel %vm422, %v776, 0
      %v849 = vsel %vm422, %v777, 0
      %851 = vmatprep.subr.mxu0 0.0
      %852 = vmatpush1.msra.mxu0 0.0
      %853 = vmatprep.subr.mxu0 0.0
      %854 = vmatpush1.msra.mxu0 0.0
      %855 = vmatprep.subr.mxu0 0.0
      %856 = vmatpush1.msra.mxu0 0.0
      %857 = vmatprep.subr.mxu0 0.0
      %858 = vmatpush1.msra.mxu0 0.0
      %859 = vmatprep.subr.mxu0 0.0
      %860 = vmatpush1.msra.mxu0 0.0
      %861 = vmatprep.subr.mxu0 0.0
      %862 = vmatpush1.msra.mxu0 0.0
      %863 = vmatprep.subr.mxu0 0.0
      %864 = vmatpush1.msra.mxu0 0.0
      %865 = vmatprep.subr.mxu0 0.0
      %866 = vmatpush1.msra.mxu0 0.0
      %867 = vmatprep.subr.mxu0 %v766
      %868 = vmatpush1.msra.mxu0 %v765
      %869 = vmatprep.subr.mxu0 %v762
      %870 = vmatpush1.msra.mxu0 %v761
      %871 = vmatprep.subr.mxu0 %v758
      %872 = vmatpush1.msra.mxu0 %v757
      %873 = vmatprep.subr.mxu0 %v754
      %874 = vmatpush1.msra.mxu0 %v753
      %875 = vmatprep.subr.mxu0 %v750
      %876 = vmatpush1.msra.mxu0 %v749
      %877 = vmatprep.subr.mxu0 %v746
      %878 = vmatpush1.msra.mxu0 %v745
      %879 = vmatprep.subr.mxu0 %v742
      %880 = vmatpush1.msra.mxu0 %v741
      %881 = vmatprep.subr.mxu0 %v738
      %882 = vmatpush1.msra.mxu0 %v737
      %883 = vmatprep.subr.mxu0 0.0
      %884 = vmatpush2.msra.mxu0 0.0
      %885 = vmatprep.subr.mxu0 0.0
      %886 = vmatpush2.msra.mxu0 0.0
      %887 = vmatprep.subr.mxu0 0.0
      %888 = vmatpush2.msra.mxu0 0.0
      %889 = vmatprep.subr.mxu0 0.0
      %890 = vmatpush2.msra.mxu0 0.0
      %891 = vmatprep.subr.mxu0 0.0
      %892 = vmatpush2.msra.mxu0 0.0
      %893 = vmatprep.subr.mxu0 0.0
      %894 = vmatpush2.msra.mxu0 0.0
      %895 = vmatprep.subr.mxu0 0.0
      %896 = vmatpush2.msra.mxu0 0.0
      %897 = vmatprep.subr.mxu0 0.0
      %898 = vmatpush2.msra.mxu0 0.0
      %899 = vmatprep.subr.mxu0 0.0
      %900 = vmatpush2.msra.mxu0 0.0
      %901 = vmatprep.subr.mxu0 0.0
      %902 = vmatpush2.msra.mxu0 0.0
      %903 = vmatprep.subr.mxu0 0.0
      %904 = vmatpush2.msra.mxu0 0.0
      %905 = vmatprep.subr.mxu0 0.0
      %906 = vmatpush2.msra.mxu0 0.0
      %907 = vmatprep.subr.mxu0 0.0
      %908 = vmatpush2.msra.mxu0 0.0
      %909 = vmatprep.subr.mxu0 0.0
      %910 = vmatpush2.msra.mxu0 0.0
      %911 = vmatprep.subr.mxu0 0.0
      %912 = vmatpush2.msra.mxu0 0.0
      %913 = vmatprep.subr.mxu0 0.0
      %914 = vmatpush2.msra.mxu0 0.0
      %915 = vmatprep.mubr.f32.mxu0 0.0
      %916 = vmatmul.mubr.f32.gmra.mxu0 %v828
      %v917 = vpop.f32.mrf.mxu0
      %v918 = vadd.f32 %v790, %v917
      %v919 = vpop.f32.mrf.mxu0
      %v920 = vadd.f32 %v790, %v919
      %921 = vmatprep.mubr.f32.mxu0 0.0
      %922 = vmatmul.mubr.f32.gmra.mxu0 %v831
      %v923 = vpop.f32.mrf.mxu0
      %v924 = vadd.f32 %v795, %v923
      %v925 = vpop.f32.mrf.mxu0
      %v926 = vadd.f32 %v795, %v925
      %927 = vmatprep.mubr.f32.mxu0 0.0
      %928 = vmatmul.mubr.f32.gmra.mxu0 %v834
      %v929 = vpop.f32.mrf.mxu0
      %v930 = vadd.f32 %v800, %v929
      %v931 = vpop.f32.mrf.mxu0
      %v932 = vadd.f32 %v800, %v931
      %933 = vmatprep.mubr.f32.mxu0 0.0
      %934 = vmatmul.mubr.f32.gmra.mxu0 %v837
      %v935 = vpop.f32.mrf.mxu0
      %v936 = vadd.f32 %v805, %v935
      %v937 = vpop.f32.mrf.mxu0
      %v938 = vadd.f32 %v805, %v937
      %939 = vmatprep.mubr.f32.mxu0 0.0
      %940 = vmatmul.mubr.f32.gmra.mxu0 %v840
      %v941 = vpop.f32.mrf.mxu0
      %v942 = vadd.f32 %v810, %v941
      %v943 = vpop.f32.mrf.mxu0
      %v944 = vadd.f32 %v810, %v943
      %945 = vmatprep.mubr.f32.mxu0 0.0
      %946 = vmatmul.mubr.f32.gmra.mxu0 %v843
      %v947 = vpop.f32.mrf.mxu0
      %v948 = vadd.f32 %v815, %v947
      %v949 = vpop.f32.mrf.mxu0
      %v950 = vadd.f32 %v815, %v949
      %951 = vmatprep.mubr.f32.mxu0 0.0
      %952 = vmatmul.mubr.f32.gmra.mxu0 %v846
      %v953 = vpop.f32.mrf.mxu0
      %v954 = vadd.f32 %v820, %v953
      %v955 = vpop.f32.mrf.mxu0
      %v956 = vadd.f32 %v820, %v955
      %957 = vmatprep.mubr.f32.mxu0 0.0
      %958 = vmatmul.mubr.f32.gmra.mxu0 %v849
      %v959 = vpop.f32.mrf.mxu0
      %v960 = vadd.f32 %v825, %v959
      %v961 = vpop.f32.mrf.mxu0
      %v962 = vadd.f32 %v825, %v961
      %963 = vdwg.mxu0
      %964 = vmatprep.subr.mxu0 0.0
      %965 = vmatpush1.msra.mxu0 0.0
      %966 = vmatprep.subr.mxu0 0.0
      %967 = vmatpush1.msra.mxu0 0.0
      %968 = vmatprep.subr.mxu0 0.0
      %969 = vmatpush1.msra.mxu0 0.0
      %970 = vmatprep.subr.mxu0 0.0
      %971 = vmatpush1.msra.mxu0 0.0
      %972 = vmatprep.subr.mxu0 0.0
      %973 = vmatpush1.msra.mxu0 0.0
      %974 = vmatprep.subr.mxu0 0.0
      %975 = vmatpush1.msra.mxu0 0.0
      %976 = vmatprep.subr.mxu0 0.0
      %977 = vmatpush1.msra.mxu0 0.0
      %978 = vmatprep.subr.mxu0 0.0
      %979 = vmatpush1.msra.mxu0 0.0
      %980 = vmatprep.subr.mxu0 %v768
      %981 = vmatpush1.msra.mxu0 %v767
      %982 = vmatprep.subr.mxu0 %v764
      %983 = vmatpush1.msra.mxu0 %v763
      %984 = vmatprep.subr.mxu0 %v760
      %985 = vmatpush1.msra.mxu0 %v759
      %986 = vmatprep.subr.mxu0 %v756
      %987 = vmatpush1.msra.mxu0 %v755
      %988 = vmatprep.subr.mxu0 %v752
      %989 = vmatpush1.msra.mxu0 %v751
      %990 = vmatprep.subr.mxu0 %v748
      %991 = vmatpush1.msra.mxu0 %v747
      %992 = vmatprep.subr.mxu0 %v744
      %993 = vmatpush1.msra.mxu0 %v743
      %994 = vmatprep.subr.mxu0 %v740
      %995 = vmatpush1.msra.mxu0 %v739
      %996 = vmatprep.subr.mxu0 0.0
      %997 = vmatpush2.msra.mxu0 0.0
      %998 = vmatprep.subr.mxu0 0.0
      %999 = vmatpush2.msra.mxu0 0.0
      %1000 = vmatprep.subr.mxu0 0.0
      %1001 = vmatpush2.msra.mxu0 0.0
      %1002 = vmatprep.subr.mxu0 0.0
      %1003 = vmatpush2.msra.mxu0 0.0
      %1004 = vmatprep.subr.mxu0 0.0
      %1005 = vmatpush2.msra.mxu0 0.0
      %1006 = vmatprep.subr.mxu0 0.0
      %1007 = vmatpush2.msra.mxu0 0.0
      %1008 = vmatprep.subr.mxu0 0.0
      %1009 = vmatpush2.msra.mxu0 0.0
      %1010 = vmatprep.subr.mxu0 0.0
      %1011 = vmatpush2.msra.mxu0 0.0
      %1012 = vmatprep.subr.mxu0 0.0
      %1013 = vmatpush2.msra.mxu0 0.0
      %1014 = vmatprep.subr.mxu0 0.0
      %1015 = vmatpush2.msra.mxu0 0.0
      %1016 = vmatprep.subr.mxu0 0.0
      %1017 = vmatpush2.msra.mxu0 0.0
      %1018 = vmatprep.subr.mxu0 0.0
      %1019 = vmatpush2.msra.mxu0 0.0
      %1020 = vmatprep.subr.mxu0 0.0
      %1021 = vmatpush2.msra.mxu0 0.0
      %1022 = vmatprep.subr.mxu0 0.0
      %1023 = vmatpush2.msra.mxu0 0.0
      %1024 = vmatprep.subr.mxu0 0.0
      %1025 = vmatpush2.msra.mxu0 0.0
      %1026 = vmatprep.subr.mxu0 0.0
      %1027 = vmatpush2.msra.mxu0 0.0
      %1028 = vmatprep.mubr.f32.mxu0 0.0
      %1029 = vmatmul.mubr.f32.gmra.mxu0 %v828
      %v1030 = vpop.f32.mrf.mxu0
      %v1031 = vadd.f32 %v790, %v1030
      %v1032 = vpop.f32.mrf.mxu0
      %v1033 = vadd.f32 %v790, %v1032
      %1034 = vmatprep.mubr.f32.mxu0 0.0
      %1035 = vmatmul.mubr.f32.gmra.mxu0 %v831
      %v1036 = vpop.f32.mrf.mxu0
      %v1037 = vadd.f32 %v795, %v1036
      %v1038 = vpop.f32.mrf.mxu0
      %v1039 = vadd.f32 %v795, %v1038
      %1040 = vmatprep.mubr.f32.mxu0 0.0
      %1041 = vmatmul.mubr.f32.gmra.mxu0 %v834
      %v1042 = vpop.f32.mrf.mxu0
      %v1043 = vadd.f32 %v800, %v1042
      %v1044 = vpop.f32.mrf.mxu0
      %v1045 = vadd.f32 %v800, %v1044
      %1046 = vmatprep.mubr.f32.mxu0 0.0
      %1047 = vmatmul.mubr.f32.gmra.mxu0 %v837
      %v1048 = vpop.f32.mrf.mxu0
      %v1049 = vadd.f32 %v805, %v1048
      %v1050 = vpop.f32.mrf.mxu0
      %v1051 = vadd.f32 %v805, %v1050
      %1052 = vmatprep.mubr.f32.mxu0 0.0
      %1053 = vmatmul.mubr.f32.gmra.mxu0 %v840
      %v1054 = vpop.f32.mrf.mxu0
      %v1055 = vadd.f32 %v810, %v1054
      %v1056 = vpop.f32.mrf.mxu0
      %v1057 = vadd.f32 %v810, %v1056
      %1058 = vmatprep.mubr.f32.mxu0 0.0
      %1059 = vmatmul.mubr.f32.gmra.mxu0 %v843
      %v1060 = vpop.f32.mrf.mxu0
      %v1061 = vadd.f32 %v815, %v1060
      %v1062 = vpop.f32.mrf.mxu0
      %v1063 = vadd.f32 %v815, %v1062
      %1064 = vmatprep.mubr.f32.mxu0 0.0
      %1065 = vmatmul.mubr.f32.gmra.mxu0 %v846
      %v1066 = vpop.f32.mrf.mxu0
      %v1067 = vadd.f32 %v820, %v1066
      %v1068 = vpop.f32.mrf.mxu0
      %v1069 = vadd.f32 %v820, %v1068
      %1070 = vmatprep.mubr.f32.mxu0 0.0
      %1071 = vmatmul.mubr.f32.gmra.mxu0 %v849
      %v1072 = vpop.f32.mrf.mxu0
      %v1073 = vadd.f32 %v825, %v1072
      %v1074 = vpop.f32.mrf.mxu0
      %v1075 = vadd.f32 %v825, %v1074
      %1076 = vdwg.mxu0
      %vm1077 = vcmp.gt.f32.partialorder %v918, 0.0
      %vm1078 = vcmp.gt.f32.partialorder %v920, 0.0
      %vm1079 = vcmp.gt.f32.partialorder %v1031, 0.0
      %vm1080 = vcmp.gt.f32.partialorder %v1033, 0.0
      %vm1081 = vcmp.gt.f32.partialorder %v924, 0.0
      %vm1082 = vcmp.gt.f32.partialorder %v926, 0.0
      %vm1083 = vcmp.gt.f32.partialorder %v1037, 0.0
      %vm1084 = vcmp.gt.f32.partialorder %v1039, 0.0
      %vm1085 = vcmp.gt.f32.partialorder %v930, 0.0
      %vm1086 = vcmp.gt.f32.partialorder %v932, 0.0
      %vm1087 = vcmp.gt.f32.partialorder %v1043, 0.0
      %vm1088 = vcmp.gt.f32.partialorder %v1045, 0.0
      %vm1089 = vcmp.gt.f32.partialorder %v936, 0.0
      %vm1090 = vcmp.gt.f32.partialorder %v938, 0.0
      %vm1091 = vcmp.gt.f32.partialorder %v1049, 0.0
      %vm1092 = vcmp.gt.f32.partialorder %v1051, 0.0
      %vm1093 = vcmp.gt.f32.partialorder %v942, 0.0
      %vm1094 = vcmp.gt.f32.partialorder %v944, 0.0
      %vm1095 = vcmp.gt.f32.partialorder %v1055, 0.0
      %vm1096 = vcmp.gt.f32.partialorder %v1057, 0.0
      %vm1097 = vcmp.gt.f32.partialorder %v948, 0.0
      %vm1098 = vcmp.gt.f32.partialorder %v950, 0.0
      %vm1099 = vcmp.gt.f32.partialorder %v1061, 0.0
      %vm1100 = vcmp.gt.f32.partialorder %v1063, 0.0
      %vm1101 = vcmp.gt.f32.partialorder %v954, 0.0
      %vm1102 = vcmp.gt.f32.partialorder %v956, 0.0
      %vm1103 = vcmp.gt.f32.partialorder %v1067, 0.0
      %vm1104 = vcmp.gt.f32.partialorder %v1069, 0.0
      %vm1105 = vcmp.gt.f32.partialorder %v960, 0.0
      %vm1106 = vcmp.gt.f32.partialorder %v962, 0.0
      %vm1107 = vcmp.gt.f32.partialorder %v1073, 0.0
      %vm1108 = vcmp.gt.f32.partialorder %v1075, 0.0
      %v1109 = vmul.f32 %v918, 0.2
      %v1110 = vmul.f32 %v920, 0.2
      %v1111 = vmul.f32 %v1031, 0.2
      %v1112 = vmul.f32 %v1033, 0.2
      %v1113 = vmul.f32 %v924, 0.2
      %v1114 = vmul.f32 %v926, 0.2
      %v1115 = vmul.f32 %v1037, 0.2
      %v1116 = vmul.f32 %v1039, 0.2
      %v1117 = vmul.f32 %v930, 0.2
      %v1118 = vmul.f32 %v932, 0.2
      %v1119 = vmul.f32 %v1043, 0.2
      %v1120 = vmul.f32 %v1045, 0.2
      %v1121 = vmul.f32 %v936, 0.2
      %v1122 = vmul.f32 %v938, 0.2
      %v1123 = vmul.f32 %v1049, 0.2
      %v1124 = vmul.f32 %v1051, 0.2
      %v1125 = vmul.f32 %v942, 0.2
      %v1126 = vmul.f32 %v944, 0.2
      %v1127 = vmul.f32 %v1055, 0.2
      %v1128 = vmul.f32 %v1057, 0.2
      %v1129 = vmul.f32 %v948, 0.2
      %v1130 = vmul.f32 %v950, 0.2
      %v1131 = vmul.f32 %v1061, 0.2
      %v1132 = vmul.f32 %v1063, 0.2
      %v1133 = vmul.f32 %v954, 0.2
      %v1134 = vmul.f32 %v956, 0.2
      %v1135 = vmul.f32 %v1067, 0.2
      %v1136 = vmul.f32 %v1069, 0.2
      %v1137 = vmul.f32 %v960, 0.2
      %v1138 = vmul.f32 %v962, 0.2
      %v1139 = vmul.f32 %v1073, 0.2
      %v1140 = vmul.f32 %v1075, 0.2
      %v1141 = vsel %vm1077, %v918, %v1109
      %v1142 = vsel %vm1078, %v920, %v1110
      %v1143 = vsel %vm1079, %v1031, %v1111
      %v1144 = vsel %vm1080, %v1033, %v1112
      %v1145 = vsel %vm1081, %v924, %v1113
      %v1146 = vsel %vm1082, %v926, %v1114
      %v1147 = vsel %vm1083, %v1037, %v1115
      %v1148 = vsel %vm1084, %v1039, %v1116
      %v1149 = vsel %vm1085, %v930, %v1117
      %v1150 = vsel %vm1086, %v932, %v1118
      %v1151 = vsel %vm1087, %v1043, %v1119
      %v1152 = vsel %vm1088, %v1045, %v1120
      %v1153 = vsel %vm1089, %v936, %v1121
      %v1154 = vsel %vm1090, %v938, %v1122
      %v1155 = vsel %vm1091, %v1049, %v1123
      %v1156 = vsel %vm1092, %v1051, %v1124
      %v1157 = vsel %vm1093, %v942, %v1125
      %v1158 = vsel %vm1094, %v944, %v1126
      %v1159 = vsel %vm1095, %v1055, %v1127
      %v1160 = vsel %vm1096, %v1057, %v1128
      %v1161 = vsel %vm1097, %v948, %v1129
      %v1162 = vsel %vm1098, %v950, %v1130
      %v1163 = vsel %vm1099, %v1061, %v1131
      %v1164 = vsel %vm1100, %v1063, %v1132
      %v1165 = vsel %vm1101, %v954, %v1133
      %v1166 = vsel %vm1102, %v956, %v1134
      %v1167 = vsel %vm1103, %v1067, %v1135
      %v1168 = vsel %vm1104, %v1069, %v1136
      %v1169 = vsel %vm1105, %v960, %v1137
      %v1170 = vsel %vm1106, %v962, %v1138
      %v1171 = vsel %vm1107, %v1073, %v1139
      %v1172 = vsel %vm1108, %v1075, %v1140
      %s1173 = scalar_lea.vmem %s1, 128
      %v1174 = vld [vmem:[%s1173] sm:$0xff]
      %v1175 = vld [vmem:[%s1173 + $0x8] sm:$0xff]
      %v1176 = vld [vmem:[%s1173 + $0x10] sm:$0xff]
      %v1177 = vld [vmem:[%s1173 + $0x18] sm:$0xff]
      %v1178 = vld [vmem:[%s1173 + $0x20] sm:$0xff]
      %v1179 = vld [vmem:[%s1173 + $0x28] sm:$0xff]
      %v1180 = vld [vmem:[%s1173 + $0x30] sm:$0xff]
      %v1181 = vld [vmem:[%s1173 + $0x38] sm:$0xff]
      %s1182 = scalar_lea.vmem %s2, 128
      %v1183 = vld [vmem:[%s1182] sm:$0xff]
      %v1184 = vld [vmem:[%s1182 + $0x8] sm:$0xff]
      %v1185 = vld [vmem:[%s1182 + $0x10] sm:$0xff]
      %v1186 = vld [vmem:[%s1182 + $0x18] sm:$0xff]
      %v1187 = vld [vmem:[%s1182 + $0x20] sm:$0xff]
      %v1188 = vld [vmem:[%s1182 + $0x28] sm:$0xff]
      %v1189 = vld [vmem:[%s1182 + $0x30] sm:$0xff]
      %v1190 = vld [vmem:[%s1182 + $0x38] sm:$0xff]
      %1192 = vset.pattern.permute.xlu0 0
      %1193 = vperm.xlu0 %1192, %v1183
      %v1194 = vpop.permute.xlu0 %1193
      %1197 = vset.pattern.permute.xlu0 0
      %1198 = vperm.xlu0 %1197, %v1184
      %v1199 = vpop.permute.xlu0 %1198
      %1202 = vset.pattern.permute.xlu0 0
      %1203 = vperm.xlu0 %1202, %v1185
      %v1204 = vpop.permute.xlu0 %1203
      %1207 = vset.pattern.permute.xlu0 0
      %1208 = vperm.xlu0 %1207, %v1186
      %v1209 = vpop.permute.xlu0 %1208
      %1212 = vset.pattern.permute.xlu0 0
      %1213 = vperm.xlu0 %1212, %v1187
      %v1214 = vpop.permute.xlu0 %1213
      %1217 = vset.pattern.permute.xlu0 0
      %1218 = vperm.xlu0 %1217, %v1188
      %v1219 = vpop.permute.xlu0 %1218
      %1222 = vset.pattern.permute.xlu0 0
      %1223 = vperm.xlu0 %1222, %v1189
      %v1224 = vpop.permute.xlu0 %1223
      %1227 = vset.pattern.permute.xlu0 0
      %1228 = vperm.xlu0 %1227, %v1190
      %v1229 = vpop.permute.xlu0 %1228
      %v1232 = vsel %vm422, %v1174, 0
      %v1235 = vsel %vm422, %v1175, 0
      %v1238 = vsel %vm422, %v1176, 0
      %v1241 = vsel %vm422, %v1177, 0
      %v1244 = vsel %vm422, %v1178, 0
      %v1247 = vsel %vm422, %v1179, 0
      %v1250 = vsel %vm422, %v1180, 0
      %v1253 = vsel %vm422, %v1181, 0
      %1255 = vmatprep.subr.mxu0 0.0
      %1256 = vmatpush1.msra.mxu0 0.0
      %1257 = vmatprep.subr.mxu0 0.0
      %1258 = vmatpush1.msra.mxu0 0.0
      %1259 = vmatprep.subr.mxu0 0.0
      %1260 = vmatpush1.msra.mxu0 0.0
      %1261 = vmatprep.subr.mxu0 0.0
      %1262 = vmatpush1.msra.mxu0 0.0
      %1263 = vmatprep.subr.mxu0 0.0
      %1264 = vmatpush1.msra.mxu0 0.0
      %1265 = vmatprep.subr.mxu0 0.0
      %1266 = vmatpush1.msra.mxu0 0.0
      %1267 = vmatprep.subr.mxu0 0.0
      %1268 = vmatpush1.msra.mxu0 0.0
      %1269 = vmatprep.subr.mxu0 0.0
      %1270 = vmatpush1.msra.mxu0 0.0
      %1271 = vmatprep.subr.mxu0 %v1170
      %1272 = vmatpush1.msra.mxu0 %v1169
      %1273 = vmatprep.subr.mxu0 %v1166
      %1274 = vmatpush1.msra.mxu0 %v1165
      %1275 = vmatprep.subr.mxu0 %v1162
      %1276 = vmatpush1.msra.mxu0 %v1161
      %1277 = vmatprep.subr.mxu0 %v1158
      %1278 = vmatpush1.msra.mxu0 %v1157
      %1279 = vmatprep.subr.mxu0 %v1154
      %1280 = vmatpush1.msra.mxu0 %v1153
      %1281 = vmatprep.subr.mxu0 %v1150
      %1282 = vmatpush1.msra.mxu0 %v1149
      %1283 = vmatprep.subr.mxu0 %v1146
      %1284 = vmatpush1.msra.mxu0 %v1145
      %1285 = vmatprep.subr.mxu0 %v1142
      %1286 = vmatpush1.msra.mxu0 %v1141
      %1287 = vmatprep.subr.mxu0 0.0
      %1288 = vmatpush2.msra.mxu0 0.0
      %1289 = vmatprep.subr.mxu0 0.0
      %1290 = vmatpush2.msra.mxu0 0.0
      %1291 = vmatprep.subr.mxu0 0.0
      %1292 = vmatpush2.msra.mxu0 0.0
      %1293 = vmatprep.subr.mxu0 0.0
      %1294 = vmatpush2.msra.mxu0 0.0
      %1295 = vmatprep.subr.mxu0 0.0
      %1296 = vmatpush2.msra.mxu0 0.0
      %1297 = vmatprep.subr.mxu0 0.0
      %1298 = vmatpush2.msra.mxu0 0.0
      %1299 = vmatprep.subr.mxu0 0.0
      %1300 = vmatpush2.msra.mxu0 0.0
      %1301 = vmatprep.subr.mxu0 0.0
      %1302 = vmatpush2.msra.mxu0 0.0
      %1303 = vmatprep.subr.mxu0 0.0
      %1304 = vmatpush2.msra.mxu0 0.0
      %1305 = vmatprep.subr.mxu0 0.0
      %1306 = vmatpush2.msra.mxu0 0.0
      %1307 = vmatprep.subr.mxu0 0.0
      %1308 = vmatpush2.msra.mxu0 0.0
      %1309 = vmatprep.subr.mxu0 0.0
      %1310 = vmatpush2.msra.mxu0 0.0
      %1311 = vmatprep.subr.mxu0 0.0
      %1312 = vmatpush2.msra.mxu0 0.0
      %1313 = vmatprep.subr.mxu0 0.0
      %1314 = vmatpush2.msra.mxu0 0.0
      %1315 = vmatprep.subr.mxu0 0.0
      %1316 = vmatpush2.msra.mxu0 0.0
      %1317 = vmatprep.subr.mxu0 0.0
      %1318 = vmatpush2.msra.mxu0 0.0
      %1319 = vmatprep.mubr.f32.mxu0 0.0
      %1320 = vmatmul.mubr.f32.gmra.mxu0 %v1232
      %v1321 = vpop.f32.mrf.mxu0
      %v1322 = vadd.f32 %v1194, %v1321
      %v1323 = vpop.f32.mrf.mxu0
      %v1324 = vadd.f32 %v1194, %v1323
      %1325 = vmatprep.mubr.f32.mxu0 0.0
      %1326 = vmatmul.mubr.f32.gmra.mxu0 %v1235
      %v1327 = vpop.f32.mrf.mxu0
      %v1328 = vadd.f32 %v1199, %v1327
      %v1329 = vpop.f32.mrf.mxu0
      %v1330 = vadd.f32 %v1199, %v1329
      %1331 = vmatprep.mubr.f32.mxu0 0.0
      %1332 = vmatmul.mubr.f32.gmra.mxu0 %v1238
      %v1333 = vpop.f32.mrf.mxu0
      %v1334 = vadd.f32 %v1204, %v1333
      %v1335 = vpop.f32.mrf.mxu0
      %v1336 = vadd.f32 %v1204, %v1335
      %1337 = vmatprep.mubr.f32.mxu0 0.0
      %1338 = vmatmul.mubr.f32.gmra.mxu0 %v1241
      %v1339 = vpop.f32.mrf.mxu0
      %v1340 = vadd.f32 %v1209, %v1339
      %v1341 = vpop.f32.mrf.mxu0
      %v1342 = vadd.f32 %v1209, %v1341
      %1343 = vmatprep.mubr.f32.mxu0 0.0
      %1344 = vmatmul.mubr.f32.gmra.mxu0 %v1244
      %v1345 = vpop.f32.mrf.mxu0
      %v1346 = vadd.f32 %v1214, %v1345
      %v1347 = vpop.f32.mrf.mxu0
      %v1348 = vadd.f32 %v1214, %v1347
      %1349 = vmatprep.mubr.f32.mxu0 0.0
      %1350 = vmatmul.mubr.f32.gmra.mxu0 %v1247
      %v1351 = vpop.f32.mrf.mxu0
      %v1352 = vadd.f32 %v1219, %v1351
      %v1353 = vpop.f32.mrf.mxu0
      %v1354 = vadd.f32 %v1219, %v1353
      %1355 = vmatprep.mubr.f32.mxu0 0.0
      %1356 = vmatmul.mubr.f32.gmra.mxu0 %v1250
      %v1357 = vpop.f32.mrf.mxu0
      %v1358 = vadd.f32 %v1224, %v1357
      %v1359 = vpop.f32.mrf.mxu0
      %v1360 = vadd.f32 %v1224, %v1359
      %1361 = vmatprep.mubr.f32.mxu0 0.0
      %1362 = vmatmul.mubr.f32.gmra.mxu0 %v1253
      %v1363 = vpop.f32.mrf.mxu0
      %v1364 = vadd.f32 %v1229, %v1363
      %v1365 = vpop.f32.mrf.mxu0
      %v1366 = vadd.f32 %v1229, %v1365
      %1367 = vdwg.mxu0
      %1368 = vmatprep.subr.mxu0 0.0
      %1369 = vmatpush1.msra.mxu0 0.0
      %1370 = vmatprep.subr.mxu0 0.0
      %1371 = vmatpush1.msra.mxu0 0.0
      %1372 = vmatprep.subr.mxu0 0.0
      %1373 = vmatpush1.msra.mxu0 0.0
      %1374 = vmatprep.subr.mxu0 0.0
      %1375 = vmatpush1.msra.mxu0 0.0
      %1376 = vmatprep.subr.mxu0 0.0
      %1377 = vmatpush1.msra.mxu0 0.0
      %1378 = vmatprep.subr.mxu0 0.0
      %1379 = vmatpush1.msra.mxu0 0.0
      %1380 = vmatprep.subr.mxu0 0.0
      %1381 = vmatpush1.msra.mxu0 0.0
      %1382 = vmatprep.subr.mxu0 0.0
      %1383 = vmatpush1.msra.mxu0 0.0
      %1384 = vmatprep.subr.mxu0 %v1172
      %1385 = vmatpush1.msra.mxu0 %v1171
      %1386 = vmatprep.subr.mxu0 %v1168
      %1387 = vmatpush1.msra.mxu0 %v1167
      %1388 = vmatprep.subr.mxu0 %v1164
      %1389 = vmatpush1.msra.mxu0 %v1163
      %1390 = vmatprep.subr.mxu0 %v1160
      %1391 = vmatpush1.msra.mxu0 %v1159
      %1392 = vmatprep.subr.mxu0 %v1156
      %1393 = vmatpush1.msra.mxu0 %v1155
      %1394 = vmatprep.subr.mxu0 %v1152
      %1395 = vmatpush1.msra.mxu0 %v1151
      %1396 = vmatprep.subr.mxu0 %v1148
      %1397 = vmatpush1.msra.mxu0 %v1147
      %1398 = vmatprep.subr.mxu0 %v1144
      %1399 = vmatpush1.msra.mxu0 %v1143
      %1400 = vmatprep.subr.mxu0 0.0
      %1401 = vmatpush2.msra.mxu0 0.0
      %1402 = vmatprep.subr.mxu0 0.0
      %1403 = vmatpush2.msra.mxu0 0.0
      %1404 = vmatprep.subr.mxu0 0.0
      %1405 = vmatpush2.msra.mxu0 0.0
      %1406 = vmatprep.subr.mxu0 0.0
      %1407 = vmatpush2.msra.mxu0 0.0
      %1408 = vmatprep.subr.mxu0 0.0
      %1409 = vmatpush2.msra.mxu0 0.0
      %1410 = vmatprep.subr.mxu0 0.0
      %1411 = vmatpush2.msra.mxu0 0.0
      %1412 = vmatprep.subr.mxu0 0.0
      %1413 = vmatpush2.msra.mxu0 0.0
      %1414 = vmatprep.subr.mxu0 0.0
      %1415 = vmatpush2.msra.mxu0 0.0
      %1416 = vmatprep.subr.mxu0 0.0
      %1417 = vmatpush2.msra.mxu0 0.0
      %1418 = vmatprep.subr.mxu0 0.0
      %1419 = vmatpush2.msra.mxu0 0.0
      %1420 = vmatprep.subr.mxu0 0.0
      %1421 = vmatpush2.msra.mxu0 0.0
      %1422 = vmatprep.subr.mxu0 0.0
      %1423 = vmatpush2.msra.mxu0 0.0
      %1424 = vmatprep.subr.mxu0 0.0
      %1425 = vmatpush2.msra.mxu0 0.0
      %1426 = vmatprep.subr.mxu0 0.0
      %1427 = vmatpush2.msra.mxu0 0.0
      %1428 = vmatprep.subr.mxu0 0.0
      %1429 = vmatpush2.msra.mxu0 0.0
      %1430 = vmatprep.subr.mxu0 0.0
      %1431 = vmatpush2.msra.mxu0 0.0
      %1432 = vmatprep.mubr.f32.mxu0 0.0
      %1433 = vmatmul.mubr.f32.gmra.mxu0 %v1232
      %v1434 = vpop.f32.mrf.mxu0
      %v1435 = vadd.f32 %v1194, %v1434
      %v1436 = vpop.f32.mrf.mxu0
      %v1437 = vadd.f32 %v1194, %v1436
      %1438 = vmatprep.mubr.f32.mxu0 0.0
      %1439 = vmatmul.mubr.f32.gmra.mxu0 %v1235
      %v1440 = vpop.f32.mrf.mxu0
      %v1441 = vadd.f32 %v1199, %v1440
      %v1442 = vpop.f32.mrf.mxu0
      %v1443 = vadd.f32 %v1199, %v1442
      %1444 = vmatprep.mubr.f32.mxu0 0.0
      %1445 = vmatmul.mubr.f32.gmra.mxu0 %v1238
      %v1446 = vpop.f32.mrf.mxu0
      %v1447 = vadd.f32 %v1204, %v1446
      %v1448 = vpop.f32.mrf.mxu0
      %v1449 = vadd.f32 %v1204, %v1448
      %1450 = vmatprep.mubr.f32.mxu0 0.0
      %1451 = vmatmul.mubr.f32.gmra.mxu0 %v1241
      %v1452 = vpop.f32.mrf.mxu0
      %v1453 = vadd.f32 %v1209, %v1452
      %v1454 = vpop.f32.mrf.mxu0
      %v1455 = vadd.f32 %v1209, %v1454
      %1456 = vmatprep.mubr.f32.mxu0 0.0
      %1457 = vmatmul.mubr.f32.gmra.mxu0 %v1244
      %v1458 = vpop.f32.mrf.mxu0
      %v1459 = vadd.f32 %v1214, %v1458
      %v1460 = vpop.f32.mrf.mxu0
      %v1461 = vadd.f32 %v1214, %v1460
      %1462 = vmatprep.mubr.f32.mxu0 0.0
      %1463 = vmatmul.mubr.f32.gmra.mxu0 %v1247
      %v1464 = vpop.f32.mrf.mxu0
      %v1465 = vadd.f32 %v1219, %v1464
      %v1466 = vpop.f32.mrf.mxu0
      %v1467 = vadd.f32 %v1219, %v1466
      %1468 = vmatprep.mubr.f32.mxu0 0.0
      %1469 = vmatmul.mubr.f32.gmra.mxu0 %v1250
      %v1470 = vpop.f32.mrf.mxu0
      %v1471 = vadd.f32 %v1224, %v1470
      %v1472 = vpop.f32.mrf.mxu0
      %v1473 = vadd.f32 %v1224, %v1472
      %1474 = vmatprep.mubr.f32.mxu0 0.0
      %1475 = vmatmul.mubr.f32.gmra.mxu0 %v1253
      %v1476 = vpop.f32.mrf.mxu0
      %v1477 = vadd.f32 %v1229, %v1476
      %v1478 = vpop.f32.mrf.mxu0
      %v1479 = vadd.f32 %v1229, %v1478
      %1480 = vdwg.mxu0
      %vm1481 = vcmp.gt.f32.partialorder %v1322, 0.0
      %vm1482 = vcmp.gt.f32.partialorder %v1324, 0.0
      %vm1483 = vcmp.gt.f32.partialorder %v1435, 0.0
      %vm1484 = vcmp.gt.f32.partialorder %v1437, 0.0
      %vm1485 = vcmp.gt.f32.partialorder %v1328, 0.0
      %vm1486 = vcmp.gt.f32.partialorder %v1330, 0.0
      %vm1487 = vcmp.gt.f32.partialorder %v1441, 0.0
      %vm1488 = vcmp.gt.f32.partialorder %v1443, 0.0
      %vm1489 = vcmp.gt.f32.partialorder %v1334, 0.0
      %vm1490 = vcmp.gt.f32.partialorder %v1336, 0.0
      %vm1491 = vcmp.gt.f32.partialorder %v1447, 0.0
      %vm1492 = vcmp.gt.f32.partialorder %v1449, 0.0
      %vm1493 = vcmp.gt.f32.partialorder %v1340, 0.0
      %vm1494 = vcmp.gt.f32.partialorder %v1342, 0.0
      %vm1495 = vcmp.gt.f32.partialorder %v1453, 0.0
      %vm1496 = vcmp.gt.f32.partialorder %v1455, 0.0
      %vm1497 = vcmp.gt.f32.partialorder %v1346, 0.0
      %vm1498 = vcmp.gt.f32.partialorder %v1348, 0.0
      %vm1499 = vcmp.gt.f32.partialorder %v1459, 0.0
      %vm1500 = vcmp.gt.f32.partialorder %v1461, 0.0
      %vm1501 = vcmp.gt.f32.partialorder %v1352, 0.0
      %vm1502 = vcmp.gt.f32.partialorder %v1354, 0.0
      %vm1503 = vcmp.gt.f32.partialorder %v1465, 0.0
      %vm1504 = vcmp.gt.f32.partialorder %v1467, 0.0
      %vm1505 = vcmp.gt.f32.partialorder %v1358, 0.0
      %vm1506 = vcmp.gt.f32.partialorder %v1360, 0.0
      %vm1507 = vcmp.gt.f32.partialorder %v1471, 0.0
      %vm1508 = vcmp.gt.f32.partialorder %v1473, 0.0
      %vm1509 = vcmp.gt.f32.partialorder %v1364, 0.0
      %vm1510 = vcmp.gt.f32.partialorder %v1366, 0.0
      %vm1511 = vcmp.gt.f32.partialorder %v1477, 0.0
      %vm1512 = vcmp.gt.f32.partialorder %v1479, 0.0
      %v1513 = vmul.f32 %v1322, 0.2
      %v1514 = vmul.f32 %v1324, 0.2
      %v1515 = vmul.f32 %v1435, 0.2
      %v1516 = vmul.f32 %v1437, 0.2
      %v1517 = vmul.f32 %v1328, 0.2
      %v1518 = vmul.f32 %v1330, 0.2
      %v1519 = vmul.f32 %v1441, 0.2
      %v1520 = vmul.f32 %v1443, 0.2
      %v1521 = vmul.f32 %v1334, 0.2
      %v1522 = vmul.f32 %v1336, 0.2
      %v1523 = vmul.f32 %v1447, 0.2
      %v1524 = vmul.f32 %v1449, 0.2
      %v1525 = vmul.f32 %v1340, 0.2
      %v1526 = vmul.f32 %v1342, 0.2
      %v1527 = vmul.f32 %v1453, 0.2
      %v1528 = vmul.f32 %v1455, 0.2
      %v1529 = vmul.f32 %v1346, 0.2
      %v1530 = vmul.f32 %v1348, 0.2
      %v1531 = vmul.f32 %v1459, 0.2
      %v1532 = vmul.f32 %v1461, 0.2
      %v1533 = vmul.f32 %v1352, 0.2
      %v1534 = vmul.f32 %v1354, 0.2
      %v1535 = vmul.f32 %v1465, 0.2
      %v1536 = vmul.f32 %v1467, 0.2
      %v1537 = vmul.f32 %v1358, 0.2
      %v1538 = vmul.f32 %v1360, 0.2
      %v1539 = vmul.f32 %v1471, 0.2
      %v1540 = vmul.f32 %v1473, 0.2
      %v1541 = vmul.f32 %v1364, 0.2
      %v1542 = vmul.f32 %v1366, 0.2
      %v1543 = vmul.f32 %v1477, 0.2
      %v1544 = vmul.f32 %v1479, 0.2
      %v1545 = vsel %vm1481, %v1322, %v1513
      %v1546 = vsel %vm1482, %v1324, %v1514
      %v1547 = vsel %vm1483, %v1435, %v1515
      %v1548 = vsel %vm1484, %v1437, %v1516
      %v1549 = vsel %vm1485, %v1328, %v1517
      %v1550 = vsel %vm1486, %v1330, %v1518
      %v1551 = vsel %vm1487, %v1441, %v1519
      %v1552 = vsel %vm1488, %v1443, %v1520
      %v1553 = vsel %vm1489, %v1334, %v1521
      %v1554 = vsel %vm1490, %v1336, %v1522
      %v1555 = vsel %vm1491, %v1447, %v1523
      %v1556 = vsel %vm1492, %v1449, %v1524
      %v1557 = vsel %vm1493, %v1340, %v1525
      %v1558 = vsel %vm1494, %v1342, %v1526
      %v1559 = vsel %vm1495, %v1453, %v1527
      %v1560 = vsel %vm1496, %v1455, %v1528
      %v1561 = vsel %vm1497, %v1346, %v1529
      %v1562 = vsel %vm1498, %v1348, %v1530
      %v1563 = vsel %vm1499, %v1459, %v1531
      %v1564 = vsel %vm1500, %v1461, %v1532
      %v1565 = vsel %vm1501, %v1352, %v1533
      %v1566 = vsel %vm1502, %v1354, %v1534
      %v1567 = vsel %vm1503, %v1465, %v1535
      %v1568 = vsel %vm1504, %v1467, %v1536
      %v1569 = vsel %vm1505, %v1358, %v1537
      %v1570 = vsel %vm1506, %v1360, %v1538
      %v1571 = vsel %vm1507, %v1471, %v1539
      %v1572 = vsel %vm1508, %v1473, %v1540
      %v1573 = vsel %vm1509, %v1364, %v1541
      %v1574 = vsel %vm1510, %v1366, %v1542
      %v1575 = vsel %vm1511, %v1477, %v1543
      %v1576 = vsel %vm1512, %v1479, %v1544
      %s1577 = scalar_lea.vmem %s1, 192
      %v1578 = vld [vmem:[%s1577] sm:$0xff]
      %v1579 = vld [vmem:[%s1577 + $0x8] sm:$0xff]
      %v1580 = vld [vmem:[%s1577 + $0x10] sm:$0xff]
      %v1581 = vld [vmem:[%s1577 + $0x18] sm:$0xff]
      %v1582 = vld [vmem:[%s1577 + $0x20] sm:$0xff]
      %v1583 = vld [vmem:[%s1577 + $0x28] sm:$0xff]
      %v1584 = vld [vmem:[%s1577 + $0x30] sm:$0xff]
      %v1585 = vld [vmem:[%s1577 + $0x38] sm:$0xff]
      %s1586 = scalar_lea.vmem %s2, 192
      %v1587 = vld [vmem:[%s1586] sm:$0xff]
      %v1588 = vld [vmem:[%s1586 + $0x8] sm:$0xff]
      %v1589 = vld [vmem:[%s1586 + $0x10] sm:$0xff]
      %v1590 = vld [vmem:[%s1586 + $0x18] sm:$0xff]
      %v1591 = vld [vmem:[%s1586 + $0x20] sm:$0xff]
      %v1592 = vld [vmem:[%s1586 + $0x28] sm:$0xff]
      %v1593 = vld [vmem:[%s1586 + $0x30] sm:$0xff]
      %v1594 = vld [vmem:[%s1586 + $0x38] sm:$0xff]
      %1596 = vset.pattern.permute.xlu0 0
      %1597 = vperm.xlu0 %1596, %v1587
      %v1598 = vpop.permute.xlu0 %1597
      %1601 = vset.pattern.permute.xlu0 0
      %1602 = vperm.xlu0 %1601, %v1588
      %v1603 = vpop.permute.xlu0 %1602
      %1606 = vset.pattern.permute.xlu0 0
      %1607 = vperm.xlu0 %1606, %v1589
      %v1608 = vpop.permute.xlu0 %1607
      %1611 = vset.pattern.permute.xlu0 0
      %1612 = vperm.xlu0 %1611, %v1590
      %v1613 = vpop.permute.xlu0 %1612
      %1616 = vset.pattern.permute.xlu0 0
      %1617 = vperm.xlu0 %1616, %v1591
      %v1618 = vpop.permute.xlu0 %1617
      %1621 = vset.pattern.permute.xlu0 0
      %1622 = vperm.xlu0 %1621, %v1592
      %v1623 = vpop.permute.xlu0 %1622
      %1626 = vset.pattern.permute.xlu0 0
      %1627 = vperm.xlu0 %1626, %v1593
      %v1628 = vpop.permute.xlu0 %1627
      %1631 = vset.pattern.permute.xlu0 0
      %1632 = vperm.xlu0 %1631, %v1594
      %v1633 = vpop.permute.xlu0 %1632
      %v1636 = vsel %vm422, %v1578, 0
      %v1639 = vsel %vm422, %v1579, 0
      %v1642 = vsel %vm422, %v1580, 0
      %v1645 = vsel %vm422, %v1581, 0
      %v1648 = vsel %vm422, %v1582, 0
      %v1651 = vsel %vm422, %v1583, 0
      %v1654 = vsel %vm422, %v1584, 0
      %v1657 = vsel %vm422, %v1585, 0
      %1659 = vmatprep.subr.mxu0 0.0
      %1660 = vmatpush1.msra.mxu0 0.0
      %1661 = vmatprep.subr.mxu0 0.0
      %1662 = vmatpush1.msra.mxu0 0.0
      %1663 = vmatprep.subr.mxu0 0.0
      %1664 = vmatpush1.msra.mxu0 0.0
      %1665 = vmatprep.subr.mxu0 0.0
      %1666 = vmatpush1.msra.mxu0 0.0
      %1667 = vmatprep.subr.mxu0 0.0
      %1668 = vmatpush1.msra.mxu0 0.0
      %1669 = vmatprep.subr.mxu0 0.0
      %1670 = vmatpush1.msra.mxu0 0.0
      %1671 = vmatprep.subr.mxu0 0.0
      %1672 = vmatpush1.msra.mxu0 0.0
      %1673 = vmatprep.subr.mxu0 0.0
      %1674 = vmatpush1.msra.mxu0 0.0
      %1675 = vmatprep.subr.mxu0 %v1574
      %1676 = vmatpush1.msra.mxu0 %v1573
      %1677 = vmatprep.subr.mxu0 %v1570
      %1678 = vmatpush1.msra.mxu0 %v1569
      %1679 = vmatprep.subr.mxu0 %v1566
      %1680 = vmatpush1.msra.mxu0 %v1565
      %1681 = vmatprep.subr.mxu0 %v1562
      %1682 = vmatpush1.msra.mxu0 %v1561
      %1683 = vmatprep.subr.mxu0 %v1558
      %1684 = vmatpush1.msra.mxu0 %v1557
      %1685 = vmatprep.subr.mxu0 %v1554
      %1686 = vmatpush1.msra.mxu0 %v1553
      %1687 = vmatprep.subr.mxu0 %v1550
      %1688 = vmatpush1.msra.mxu0 %v1549
      %1689 = vmatprep.subr.mxu0 %v1546
      %1690 = vmatpush1.msra.mxu0 %v1545
      %1691 = vmatprep.subr.mxu0 0.0
      %1692 = vmatpush2.msra.mxu0 0.0
      %1693 = vmatprep.subr.mxu0 0.0
      %1694 = vmatpush2.msra.mxu0 0.0
      %1695 = vmatprep.subr.mxu0 0.0
      %1696 = vmatpush2.msra.mxu0 0.0
      %1697 = vmatprep.subr.mxu0 0.0
      %1698 = vmatpush2.msra.mxu0 0.0
      %1699 = vmatprep.subr.mxu0 0.0
      %1700 = vmatpush2.msra.mxu0 0.0
      %1701 = vmatprep.subr.mxu0 0.0
      %1702 = vmatpush2.msra.mxu0 0.0
      %1703 = vmatprep.subr.mxu0 0.0
      %1704 = vmatpush2.msra.mxu0 0.0
      %1705 = vmatprep.subr.mxu0 0.0
      %1706 = vmatpush2.msra.mxu0 0.0
      %1707 = vmatprep.subr.mxu0 0.0
      %1708 = vmatpush2.msra.mxu0 0.0
      %1709 = vmatprep.subr.mxu0 0.0
      %1710 = vmatpush2.msra.mxu0 0.0
      %1711 = vmatprep.subr.mxu0 0.0
      %1712 = vmatpush2.msra.mxu0 0.0
      %1713 = vmatprep.subr.mxu0 0.0
      %1714 = vmatpush2.msra.mxu0 0.0
      %1715 = vmatprep.subr.mxu0 0.0
      %1716 = vmatpush2.msra.mxu0 0.0
      %1717 = vmatprep.subr.mxu0 0.0
      %1718 = vmatpush2.msra.mxu0 0.0
      %1719 = vmatprep.subr.mxu0 0.0
      %1720 = vmatpush2.msra.mxu0 0.0
      %1721 = vmatprep.subr.mxu0 0.0
      %1722 = vmatpush2.msra.mxu0 0.0
      %1723 = vmatprep.mubr.f32.mxu0 0.0
      %1724 = vmatmul.mubr.f32.gmra.mxu0 %v1636
      %v1725 = vpop.f32.mrf.mxu0
      %v1726 = vadd.f32 %v1598, %v1725
      %v1727 = vpop.f32.mrf.mxu0
      %v1728 = vadd.f32 %v1598, %v1727
      %1729 = vmatprep.mubr.f32.mxu0 0.0
      %1730 = vmatmul.mubr.f32.gmra.mxu0 %v1639
      %v1731 = vpop.f32.mrf.mxu0
      %v1732 = vadd.f32 %v1603, %v1731
      %v1733 = vpop.f32.mrf.mxu0
      %v1734 = vadd.f32 %v1603, %v1733
      %1735 = vmatprep.mubr.f32.mxu0 0.0
      %1736 = vmatmul.mubr.f32.gmra.mxu0 %v1642
      %v1737 = vpop.f32.mrf.mxu0
      %v1738 = vadd.f32 %v1608, %v1737
      %v1739 = vpop.f32.mrf.mxu0
      %v1740 = vadd.f32 %v1608, %v1739
      %1741 = vmatprep.mubr.f32.mxu0 0.0
      %1742 = vmatmul.mubr.f32.gmra.mxu0 %v1645
      %v1743 = vpop.f32.mrf.mxu0
      %v1744 = vadd.f32 %v1613, %v1743
      %v1745 = vpop.f32.mrf.mxu0
      %v1746 = vadd.f32 %v1613, %v1745
      %1747 = vmatprep.mubr.f32.mxu0 0.0
      %1748 = vmatmul.mubr.f32.gmra.mxu0 %v1648
      %v1749 = vpop.f32.mrf.mxu0
      %v1750 = vadd.f32 %v1618, %v1749
      %v1751 = vpop.f32.mrf.mxu0
      %v1752 = vadd.f32 %v1618, %v1751
      %1753 = vmatprep.mubr.f32.mxu0 0.0
      %1754 = vmatmul.mubr.f32.gmra.mxu0 %v1651
      %v1755 = vpop.f32.mrf.mxu0
      %v1756 = vadd.f32 %v1623, %v1755
      %v1757 = vpop.f32.mrf.mxu0
      %v1758 = vadd.f32 %v1623, %v1757
      %1759 = vmatprep.mubr.f32.mxu0 0.0
      %1760 = vmatmul.mubr.f32.gmra.mxu0 %v1654
      %v1761 = vpop.f32.mrf.mxu0
      %v1762 = vadd.f32 %v1628, %v1761
      %v1763 = vpop.f32.mrf.mxu0
      %v1764 = vadd.f32 %v1628, %v1763
      %1765 = vmatprep.mubr.f32.mxu0 0.0
      %1766 = vmatmul.mubr.f32.gmra.mxu0 %v1657
      %v1767 = vpop.f32.mrf.mxu0
      %v1768 = vadd.f32 %v1633, %v1767
      %v1769 = vpop.f32.mrf.mxu0
      %v1770 = vadd.f32 %v1633, %v1769
      %1771 = vdwg.mxu0
      %1772 = vmatprep.subr.mxu0 0.0
      %1773 = vmatpush1.msra.mxu0 0.0
      %1774 = vmatprep.subr.mxu0 0.0
      %1775 = vmatpush1.msra.mxu0 0.0
      %1776 = vmatprep.subr.mxu0 0.0
      %1777 = vmatpush1.msra.mxu0 0.0
      %1778 = vmatprep.subr.mxu0 0.0
      %1779 = vmatpush1.msra.mxu0 0.0
      %1780 = vmatprep.subr.mxu0 0.0
      %1781 = vmatpush1.msra.mxu0 0.0
      %1782 = vmatprep.subr.mxu0 0.0
      %1783 = vmatpush1.msra.mxu0 0.0
      %1784 = vmatprep.subr.mxu0 0.0
      %1785 = vmatpush1.msra.mxu0 0.0
      %1786 = vmatprep.subr.mxu0 0.0
      %1787 = vmatpush1.msra.mxu0 0.0
      %1788 = vmatprep.subr.mxu0 %v1576
      %1789 = vmatpush1.msra.mxu0 %v1575
      %1790 = vmatprep.subr.mxu0 %v1572
      %1791 = vmatpush1.msra.mxu0 %v1571
      %1792 = vmatprep.subr.mxu0 %v1568
      %1793 = vmatpush1.msra.mxu0 %v1567
      %1794 = vmatprep.subr.mxu0 %v1564
      %1795 = vmatpush1.msra.mxu0 %v1563
      %1796 = vmatprep.subr.mxu0 %v1560
      %1797 = vmatpush1.msra.mxu0 %v1559
      %1798 = vmatprep.subr.mxu0 %v1556
      %1799 = vmatpush1.msra.mxu0 %v1555
      %1800 = vmatprep.subr.mxu0 %v1552
      %1801 = vmatpush1.msra.mxu0 %v1551
      %1802 = vmatprep.subr.mxu0 %v1548
      %1803 = vmatpush1.msra.mxu0 %v1547
      %1804 = vmatprep.subr.mxu0 0.0
      %1805 = vmatpush2.msra.mxu0 0.0
      %1806 = vmatprep.subr.mxu0 0.0
      %1807 = vmatpush2.msra.mxu0 0.0
      %1808 = vmatprep.subr.mxu0 0.0
      %1809 = vmatpush2.msra.mxu0 0.0
      %1810 = vmatprep.subr.mxu0 0.0
      %1811 = vmatpush2.msra.mxu0 0.0
      %1812 = vmatprep.subr.mxu0 0.0
      %1813 = vmatpush2.msra.mxu0 0.0
      %1814 = vmatprep.subr.mxu0 0.0
      %1815 = vmatpush2.msra.mxu0 0.0
      %1816 = vmatprep.subr.mxu0 0.0
      %1817 = vmatpush2.msra.mxu0 0.0
      %1818 = vmatprep.subr.mxu0 0.0
      %1819 = vmatpush2.msra.mxu0 0.0
      %1820 = vmatprep.subr.mxu0 0.0
      %1821 = vmatpush2.msra.mxu0 0.0
      %1822 = vmatprep.subr.mxu0 0.0
      %1823 = vmatpush2.msra.mxu0 0.0
      %1824 = vmatprep.subr.mxu0 0.0
      %1825 = vmatpush2.msra.mxu0 0.0
      %1826 = vmatprep.subr.mxu0 0.0
      %1827 = vmatpush2.msra.mxu0 0.0
      %1828 = vmatprep.subr.mxu0 0.0
      %1829 = vmatpush2.msra.mxu0 0.0
      %1830 = vmatprep.subr.mxu0 0.0
      %1831 = vmatpush2.msra.mxu0 0.0
      %1832 = vmatprep.subr.mxu0 0.0
      %1833 = vmatpush2.msra.mxu0 0.0
      %1834 = vmatprep.subr.mxu0 0.0
      %1835 = vmatpush2.msra.mxu0 0.0
      %1836 = vmatprep.mubr.f32.mxu0 0.0
      %1837 = vmatmul.mubr.f32.gmra.mxu0 %v1636
      %v1838 = vpop.f32.mrf.mxu0
      %v1839 = vadd.f32 %v1598, %v1838
      %v1840 = vpop.f32.mrf.mxu0
      %v1841 = vadd.f32 %v1598, %v1840
      %1842 = vmatprep.mubr.f32.mxu0 0.0
      %1843 = vmatmul.mubr.f32.gmra.mxu0 %v1639
      %v1844 = vpop.f32.mrf.mxu0
      %v1845 = vadd.f32 %v1603, %v1844
      %v1846 = vpop.f32.mrf.mxu0
      %v1847 = vadd.f32 %v1603, %v1846
      %1848 = vmatprep.mubr.f32.mxu0 0.0
      %1849 = vmatmul.mubr.f32.gmra.mxu0 %v1642
      %v1850 = vpop.f32.mrf.mxu0
      %v1851 = vadd.f32 %v1608, %v1850
      %v1852 = vpop.f32.mrf.mxu0
      %v1853 = vadd.f32 %v1608, %v1852
      %1854 = vmatprep.mubr.f32.mxu0 0.0
      %1855 = vmatmul.mubr.f32.gmra.mxu0 %v1645
      %v1856 = vpop.f32.mrf.mxu0
      %v1857 = vadd.f32 %v1613, %v1856
      %v1858 = vpop.f32.mrf.mxu0
      %v1859 = vadd.f32 %v1613, %v1858
      %1860 = vmatprep.mubr.f32.mxu0 0.0
      %1861 = vmatmul.mubr.f32.gmra.mxu0 %v1648
      %v1862 = vpop.f32.mrf.mxu0
      %v1863 = vadd.f32 %v1618, %v1862
      %v1864 = vpop.f32.mrf.mxu0
      %v1865 = vadd.f32 %v1618, %v1864
      %1866 = vmatprep.mubr.f32.mxu0 0.0
      %1867 = vmatmul.mubr.f32.gmra.mxu0 %v1651
      %v1868 = vpop.f32.mrf.mxu0
      %v1869 = vadd.f32 %v1623, %v1868
      %v1870 = vpop.f32.mrf.mxu0
      %v1871 = vadd.f32 %v1623, %v1870
      %1872 = vmatprep.mubr.f32.mxu0 0.0
      %1873 = vmatmul.mubr.f32.gmra.mxu0 %v1654
      %v1874 = vpop.f32.mrf.mxu0
      %v1875 = vadd.f32 %v1628, %v1874
      %v1876 = vpop.f32.mrf.mxu0
      %v1877 = vadd.f32 %v1628, %v1876
      %1878 = vmatprep.mubr.f32.mxu0 0.0
      %1879 = vmatmul.mubr.f32.gmra.mxu0 %v1657
      %v1880 = vpop.f32.mrf.mxu0
      %v1881 = vadd.f32 %v1633, %v1880
      %v1882 = vpop.f32.mrf.mxu0
      %v1883 = vadd.f32 %v1633, %v1882
      %1884 = vdwg.mxu0
      %vm1885 = vcmp.gt.f32.partialorder %v1726, 0.0
      %vm1886 = vcmp.gt.f32.partialorder %v1728, 0.0
      %vm1887 = vcmp.gt.f32.partialorder %v1839, 0.0
      %vm1888 = vcmp.gt.f32.partialorder %v1841, 0.0
      %vm1889 = vcmp.gt.f32.partialorder %v1732, 0.0
      %vm1890 = vcmp.gt.f32.partialorder %v1734, 0.0
      %vm1891 = vcmp.gt.f32.partialorder %v1845, 0.0
      %vm1892 = vcmp.gt.f32.partialorder %v1847, 0.0
      %vm1893 = vcmp.gt.f32.partialorder %v1738, 0.0
      %vm1894 = vcmp.gt.f32.partialorder %v1740, 0.0
      %vm1895 = vcmp.gt.f32.partialorder %v1851, 0.0
      %vm1896 = vcmp.gt.f32.partialorder %v1853, 0.0
      %vm1897 = vcmp.gt.f32.partialorder %v1744, 0.0
      %vm1898 = vcmp.gt.f32.partialorder %v1746, 0.0
      %vm1899 = vcmp.gt.f32.partialorder %v1857, 0.0
      %vm1900 = vcmp.gt.f32.partialorder %v1859, 0.0
      %vm1901 = vcmp.gt.f32.partialorder %v1750, 0.0
      %vm1902 = vcmp.gt.f32.partialorder %v1752, 0.0
      %vm1903 = vcmp.gt.f32.partialorder %v1863, 0.0
      %vm1904 = vcmp.gt.f32.partialorder %v1865, 0.0
      %vm1905 = vcmp.gt.f32.partialorder %v1756, 0.0
      %vm1906 = vcmp.gt.f32.partialorder %v1758, 0.0
      %vm1907 = vcmp.gt.f32.partialorder %v1869, 0.0
      %vm1908 = vcmp.gt.f32.partialorder %v1871, 0.0
      %vm1909 = vcmp.gt.f32.partialorder %v1762, 0.0
      %vm1910 = vcmp.gt.f32.partialorder %v1764, 0.0
      %vm1911 = vcmp.gt.f32.partialorder %v1875, 0.0
      %vm1912 = vcmp.gt.f32.partialorder %v1877, 0.0
      %vm1913 = vcmp.gt.f32.partialorder %v1768, 0.0
      %vm1914 = vcmp.gt.f32.partialorder %v1770, 0.0
      %vm1915 = vcmp.gt.f32.partialorder %v1881, 0.0
      %vm1916 = vcmp.gt.f32.partialorder %v1883, 0.0
      %v1917 = vmul.f32 %v1726, 0.2
      %v1918 = vmul.f32 %v1728, 0.2
      %v1919 = vmul.f32 %v1839, 0.2
      %v1920 = vmul.f32 %v1841, 0.2
      %v1921 = vmul.f32 %v1732, 0.2
      %v1922 = vmul.f32 %v1734, 0.2
      %v1923 = vmul.f32 %v1845, 0.2
      %v1924 = vmul.f32 %v1847, 0.2
      %v1925 = vmul.f32 %v1738, 0.2
      %v1926 = vmul.f32 %v1740, 0.2
      %v1927 = vmul.f32 %v1851, 0.2
      %v1928 = vmul.f32 %v1853, 0.2
      %v1929 = vmul.f32 %v1744, 0.2
      %v1930 = vmul.f32 %v1746, 0.2
      %v1931 = vmul.f32 %v1857, 0.2
      %v1932 = vmul.f32 %v1859, 0.2
      %v1933 = vmul.f32 %v1750, 0.2
      %v1934 = vmul.f32 %v1752, 0.2
      %v1935 = vmul.f32 %v1863, 0.2
      %v1936 = vmul.f32 %v1865, 0.2
      %v1937 = vmul.f32 %v1756, 0.2
      %v1938 = vmul.f32 %v1758, 0.2
      %v1939 = vmul.f32 %v1869, 0.2
      %v1940 = vmul.f32 %v1871, 0.2
      %v1941 = vmul.f32 %v1762, 0.2
      %v1942 = vmul.f32 %v1764, 0.2
      %v1943 = vmul.f32 %v1875, 0.2
      %v1944 = vmul.f32 %v1877, 0.2
      %v1945 = vmul.f32 %v1768, 0.2
      %v1946 = vmul.f32 %v1770, 0.2
      %v1947 = vmul.f32 %v1881, 0.2
      %v1948 = vmul.f32 %v1883, 0.2
      %v1949 = vsel %vm1885, %v1726, %v1917
      %v1950 = vsel %vm1886, %v1728, %v1918
      %v1951 = vsel %vm1887, %v1839, %v1919
      %v1952 = vsel %vm1888, %v1841, %v1920
      %v1953 = vsel %vm1889, %v1732, %v1921
      %v1954 = vsel %vm1890, %v1734, %v1922
      %v1955 = vsel %vm1891, %v1845, %v1923
      %v1956 = vsel %vm1892, %v1847, %v1924
      %v1957 = vsel %vm1893, %v1738, %v1925
      %v1958 = vsel %vm1894, %v1740, %v1926
      %v1959 = vsel %vm1895, %v1851, %v1927
      %v1960 = vsel %vm1896, %v1853, %v1928
      %v1961 = vsel %vm1897, %v1744, %v1929
      %v1962 = vsel %vm1898, %v1746, %v1930
      %v1963 = vsel %vm1899, %v1857, %v1931
      %v1964 = vsel %vm1900, %v1859, %v1932
      %v1965 = vsel %vm1901, %v1750, %v1933
      %v1966 = vsel %vm1902, %v1752, %v1934
      %v1967 = vsel %vm1903, %v1863, %v1935
      %v1968 = vsel %vm1904, %v1865, %v1936
      %v1969 = vsel %vm1905, %v1756, %v1937
      %v1970 = vsel %vm1906, %v1758, %v1938
      %v1971 = vsel %vm1907, %v1869, %v1939
      %v1972 = vsel %vm1908, %v1871, %v1940
      %v1973 = vsel %vm1909, %v1762, %v1941
      %v1974 = vsel %vm1910, %v1764, %v1942
      %v1975 = vsel %vm1911, %v1875, %v1943
      %v1976 = vsel %vm1912, %v1877, %v1944
      %v1977 = vsel %vm1913, %v1768, %v1945
      %v1978 = vsel %vm1914, %v1770, %v1946
      %v1979 = vsel %vm1915, %v1881, %v1947
      %v1980 = vsel %vm1916, %v1883, %v1948
      %s1981 = scalar_lea.vmem %s1, 256
      %v1982 = vld [vmem:[%s1981] sm:$0xff]
      %v1983 = vld [vmem:[%s1981 + $0x8] sm:$0xff]
      %v1984 = vld [vmem:[%s1981 + $0x10] sm:$0xff]
      %v1985 = vld [vmem:[%s1981 + $0x18] sm:$0xff]
      %v1986 = vld [vmem:[%s1981 + $0x20] sm:$0xff]
      %v1987 = vld [vmem:[%s1981 + $0x28] sm:$0xff]
      %v1988 = vld [vmem:[%s1981 + $0x30] sm:$0xff]
      %v1989 = vld [vmem:[%s1981 + $0x38] sm:$0xff]
      %s1990 = scalar_lea.vmem %s2, 256
      %v1991 = vld [vmem:[%s1990] sm:$0xff]
      %v1992 = vld [vmem:[%s1990 + $0x8] sm:$0xff]
      %v1993 = vld [vmem:[%s1990 + $0x10] sm:$0xff]
      %v1994 = vld [vmem:[%s1990 + $0x18] sm:$0xff]
      %v1995 = vld [vmem:[%s1990 + $0x20] sm:$0xff]
      %v1996 = vld [vmem:[%s1990 + $0x28] sm:$0xff]
      %v1997 = vld [vmem:[%s1990 + $0x30] sm:$0xff]
      %v1998 = vld [vmem:[%s1990 + $0x38] sm:$0xff]
      %2000 = vset.pattern.permute.xlu0 0
      %2001 = vperm.xlu0 %2000, %v1991
      %v2002 = vpop.permute.xlu0 %2001
      %2005 = vset.pattern.permute.xlu0 0
      %2006 = vperm.xlu0 %2005, %v1992
      %v2007 = vpop.permute.xlu0 %2006
      %2010 = vset.pattern.permute.xlu0 0
      %2011 = vperm.xlu0 %2010, %v1993
      %v2012 = vpop.permute.xlu0 %2011
      %2015 = vset.pattern.permute.xlu0 0
      %2016 = vperm.xlu0 %2015, %v1994
      %v2017 = vpop.permute.xlu0 %2016
      %2020 = vset.pattern.permute.xlu0 0
      %2021 = vperm.xlu0 %2020, %v1995
      %v2022 = vpop.permute.xlu0 %2021
      %2024 = vset.pattern.permute.xlu0 0
      %2025 = vperm.xlu0 %2024, %v1996
      %v2026 = vpop.permute.xlu0 %2025
      %2028 = vset.pattern.permute.xlu0 0
      %2029 = vperm.xlu0 %2028, %v1997
      %v2030 = vpop.permute.xlu0 %2029
      %2032 = vset.pattern.permute.xlu0 0
      %2033 = vperm.xlu0 %2032, %v1998
      %v2034 = vpop.permute.xlu0 %2033
      %v2036 = vsel %vm422, %v1982, 0
      %v2039 = vsel %vm422, %v1983, 0
      %v2042 = vsel %vm422, %v1984, 0
      %v2045 = vsel %vm422, %v1985, 0
      %v2048 = vsel %vm422, %v1986, 0
      %v2051 = vsel %vm422, %v1987, 0
      %v2054 = vsel %vm422, %v1988, 0
      %v2057 = vsel %vm422, %v1989, 0
      %2059 = vmatprep.subr.mxu0 0.0
      %2060 = vmatpush1.msra.mxu0 0.0
      %2061 = vmatprep.subr.mxu0 0.0
      %2062 = vmatpush1.msra.mxu0 0.0
      %2063 = vmatprep.subr.mxu0 0.0
      %2064 = vmatpush1.msra.mxu0 0.0
      %2065 = vmatprep.subr.mxu0 0.0
      %2066 = vmatpush1.msra.mxu0 0.0
      %2067 = vmatprep.subr.mxu0 0.0
      %2068 = vmatpush1.msra.mxu0 0.0
      %2069 = vmatprep.subr.mxu0 0.0
      %2070 = vmatpush1.msra.mxu0 0.0
      %2071 = vmatprep.subr.mxu0 0.0
      %2072 = vmatpush1.msra.mxu0 0.0
      %2073 = vmatprep.subr.mxu0 0.0
      %2074 = vmatpush1.msra.mxu0 0.0
      %2075 = vmatprep.subr.mxu0 %v1978
      %2076 = vmatpush1.msra.mxu0 %v1977
      %2077 = vmatprep.subr.mxu0 %v1974
      %2078 = vmatpush1.msra.mxu0 %v1973
      %2079 = vmatprep.subr.mxu0 %v1970
      %2080 = vmatpush1.msra.mxu0 %v1969
      %2081 = vmatprep.subr.mxu0 %v1966
      %2082 = vmatpush1.msra.mxu0 %v1965
      %2083 = vmatprep.subr.mxu0 %v1962
      %2084 = vmatpush1.msra.mxu0 %v1961
      %2085 = vmatprep.subr.mxu0 %v1958
      %2086 = vmatpush1.msra.mxu0 %v1957
      %2087 = vmatprep.subr.mxu0 %v1954
      %2088 = vmatpush1.msra.mxu0 %v1953
      %2089 = vmatprep.subr.mxu0 %v1950
      %2090 = vmatpush1.msra.mxu0 %v1949
      %2091 = vmatprep.subr.mxu0 0.0
      %2092 = vmatpush2.msra.mxu0 0.0
      %2093 = vmatprep.subr.mxu0 0.0
      %2094 = vmatpush2.msra.mxu0 0.0
      %2095 = vmatprep.subr.mxu0 0.0
      %2096 = vmatpush2.msra.mxu0 0.0
      %2097 = vmatprep.subr.mxu0 0.0
      %2098 = vmatpush2.msra.mxu0 0.0
      %2099 = vmatprep.subr.mxu0 0.0
      %2100 = vmatpush2.msra.mxu0 0.0
      %2101 = vmatprep.subr.mxu0 0.0
      %2102 = vmatpush2.msra.mxu0 0.0
      %2103 = vmatprep.subr.mxu0 0.0
      %2104 = vmatpush2.msra.mxu0 0.0
      %2105 = vmatprep.subr.mxu0 0.0
      %2106 = vmatpush2.msra.mxu0 0.0
      %2107 = vmatprep.subr.mxu0 0.0
      %2108 = vmatpush2.msra.mxu0 0.0
      %2109 = vmatprep.subr.mxu0 0.0
      %2110 = vmatpush2.msra.mxu0 0.0
      %2111 = vmatprep.subr.mxu0 0.0
      %2112 = vmatpush2.msra.mxu0 0.0
      %2113 = vmatprep.subr.mxu0 0.0
      %2114 = vmatpush2.msra.mxu0 0.0
      %2115 = vmatprep.subr.mxu0 0.0
      %2116 = vmatpush2.msra.mxu0 0.0
      %2117 = vmatprep.subr.mxu0 0.0
      %2118 = vmatpush2.msra.mxu0 0.0
      %2119 = vmatprep.subr.mxu0 0.0
      %2120 = vmatpush2.msra.mxu0 0.0
      %2121 = vmatprep.subr.mxu0 0.0
      %2122 = vmatpush2.msra.mxu0 0.0
      %2123 = vmatprep.mubr.f32.mxu0 0.0
      %2124 = vmatmul.mubr.f32.gmra.mxu0 %v2036
      %v2125 = vpop.f32.mrf.mxu0
      %v2126 = vadd.f32 %v2002, %v2125
      %v2127 = vpop.f32.mrf.mxu0
      %v2128 = vadd.f32 %v2002, %v2127
      %2129 = vmatprep.mubr.f32.mxu0 0.0
      %2130 = vmatmul.mubr.f32.gmra.mxu0 %v2039
      %v2131 = vpop.f32.mrf.mxu0
      %v2132 = vadd.f32 %v2007, %v2131
      %v2133 = vpop.f32.mrf.mxu0
      %v2134 = vadd.f32 %v2007, %v2133
      %2135 = vmatprep.mubr.f32.mxu0 0.0
      %2136 = vmatmul.mubr.f32.gmra.mxu0 %v2042
      %v2137 = vpop.f32.mrf.mxu0
      %v2138 = vadd.f32 %v2012, %v2137
      %v2139 = vpop.f32.mrf.mxu0
      %v2140 = vadd.f32 %v2012, %v2139
      %2141 = vmatprep.mubr.f32.mxu0 0.0
      %2142 = vmatmul.mubr.f32.gmra.mxu0 %v2045
      %v2143 = vpop.f32.mrf.mxu0
      %v2144 = vadd.f32 %v2017, %v2143
      %v2145 = vpop.f32.mrf.mxu0
      %v2146 = vadd.f32 %v2017, %v2145
      %2147 = vmatprep.mubr.f32.mxu0 0.0
      %2148 = vmatmul.mubr.f32.gmra.mxu0 %v2048
      %v2149 = vpop.f32.mrf.mxu0
      %v2150 = vpop.f32.mrf.mxu0
      %2151 = vmatprep.mubr.f32.mxu0 0.0
      %2152 = vmatmul.mubr.f32.gmra.mxu0 %v2051
      %v2153 = vpop.f32.mrf.mxu0
      %v2154 = vpop.f32.mrf.mxu0
      %2155 = vmatprep.mubr.f32.mxu0 0.0
      %2156 = vmatmul.mubr.f32.gmra.mxu0 %v2054
      %v2157 = vpop.f32.mrf.mxu0
      %v2158 = vpop.f32.mrf.mxu0
      %2159 = vmatprep.mubr.f32.mxu0 0.0
      %2160 = vmatmul.mubr.f32.gmra.mxu0 %v2057
      %v2161 = vpop.f32.mrf.mxu0
      %v2162 = vpop.f32.mrf.mxu0
      %2163 = vdwg.mxu0
      %2164 = vmatprep.subr.mxu0 0.0
      %2165 = vmatpush1.msra.mxu0 0.0
      %2166 = vmatprep.subr.mxu0 0.0
      %2167 = vmatpush1.msra.mxu0 0.0
      %2168 = vmatprep.subr.mxu0 0.0
      %2169 = vmatpush1.msra.mxu0 0.0
      %2170 = vmatprep.subr.mxu0 0.0
      %2171 = vmatpush1.msra.mxu0 0.0
      %2172 = vmatprep.subr.mxu0 0.0
      %2173 = vmatpush1.msra.mxu0 0.0
      %2174 = vmatprep.subr.mxu0 0.0
      %2175 = vmatpush1.msra.mxu0 0.0
      %2176 = vmatprep.subr.mxu0 0.0
      %2177 = vmatpush1.msra.mxu0 0.0
      %2178 = vmatprep.subr.mxu0 0.0
      %2179 = vmatpush1.msra.mxu0 0.0
      %2180 = vmatprep.subr.mxu0 %v1980
      %2181 = vmatpush1.msra.mxu0 %v1979
      %2182 = vmatprep.subr.mxu0 %v1976
      %2183 = vmatpush1.msra.mxu0 %v1975
      %2184 = vmatprep.subr.mxu0 %v1972
      %2185 = vmatpush1.msra.mxu0 %v1971
      %2186 = vmatprep.subr.mxu0 %v1968
      %2187 = vmatpush1.msra.mxu0 %v1967
      %2188 = vmatprep.subr.mxu0 %v1964
      %2189 = vmatpush1.msra.mxu0 %v1963
      %2190 = vmatprep.subr.mxu0 %v1960
      %2191 = vmatpush1.msra.mxu0 %v1959
      %2192 = vmatprep.subr.mxu0 %v1956
      %2193 = vmatpush1.msra.mxu0 %v1955
      %2194 = vmatprep.subr.mxu0 %v1952
      %2195 = vmatpush1.msra.mxu0 %v1951
      %2196 = vmatprep.subr.mxu0 0.0
      %2197 = vmatpush2.msra.mxu0 0.0
      %2198 = vmatprep.subr.mxu0 0.0
      %2199 = vmatpush2.msra.mxu0 0.0
      %2200 = vmatprep.subr.mxu0 0.0
      %2201 = vmatpush2.msra.mxu0 0.0
      %2202 = vmatprep.subr.mxu0 0.0
      %2203 = vmatpush2.msra.mxu0 0.0
      %2204 = vmatprep.subr.mxu0 0.0
      %2205 = vmatpush2.msra.mxu0 0.0
      %2206 = vmatprep.subr.mxu0 0.0
      %2207 = vmatpush2.msra.mxu0 0.0
      %2208 = vmatprep.subr.mxu0 0.0
      %2209 = vmatpush2.msra.mxu0 0.0
      %2210 = vmatprep.subr.mxu0 0.0
      %2211 = vmatpush2.msra.mxu0 0.0
      %2212 = vmatprep.subr.mxu0 0.0
      %2213 = vmatpush2.msra.mxu0 0.0
      %2214 = vmatprep.subr.mxu0 0.0
      %2215 = vmatpush2.msra.mxu0 0.0
      %2216 = vmatprep.subr.mxu0 0.0
      %2217 = vmatpush2.msra.mxu0 0.0
      %2218 = vmatprep.subr.mxu0 0.0
      %2219 = vmatpush2.msra.mxu0 0.0
      %2220 = vmatprep.subr.mxu0 0.0
      %2221 = vmatpush2.msra.mxu0 0.0
      %2222 = vmatprep.subr.mxu0 0.0
      %2223 = vmatpush2.msra.mxu0 0.0
      %2224 = vmatprep.subr.mxu0 0.0
      %2225 = vmatpush2.msra.mxu0 0.0
      %2226 = vmatprep.subr.mxu0 0.0
      %2227 = vmatpush2.msra.mxu0 0.0
      %2228 = vmatprep.mubr.f32.mxu0 0.0
      %2229 = vmatmul.mubr.f32.gmra.mxu0 %v2036
      %v2230 = vpop.f32.mrf.mxu0
      %v2231 = vadd.f32 %v2002, %v2230
      %v2232 = vpop.f32.mrf.mxu0
      %v2233 = vadd.f32 %v2002, %v2232
      %2234 = vmatprep.mubr.f32.mxu0 0.0
      %2235 = vmatmul.mubr.f32.gmra.mxu0 %v2039
      %v2236 = vpop.f32.mrf.mxu0
      %v2237 = vadd.f32 %v2007, %v2236
      %v2238 = vpop.f32.mrf.mxu0
      %v2239 = vadd.f32 %v2007, %v2238
      %2240 = vmatprep.mubr.f32.mxu0 0.0
      %2241 = vmatmul.mubr.f32.gmra.mxu0 %v2042
      %v2242 = vpop.f32.mrf.mxu0
      %v2243 = vadd.f32 %v2012, %v2242
      %v2244 = vpop.f32.mrf.mxu0
      %v2245 = vadd.f32 %v2012, %v2244
      %2246 = vmatprep.mubr.f32.mxu0 0.0
      %2247 = vmatmul.mubr.f32.gmra.mxu0 %v2045
      %v2248 = vpop.f32.mrf.mxu0
      %v2249 = vadd.f32 %v2017, %v2248
      %v2250 = vpop.f32.mrf.mxu0
      %v2251 = vadd.f32 %v2017, %v2250
      %2252 = vmatprep.mubr.f32.mxu0 0.0
      %2253 = vmatmul.mubr.f32.gmra.mxu0 %v2048
      %v2254 = vpop.f32.mrf.mxu0
      %v2255 = vpop.f32.mrf.mxu0
      %2256 = vmatprep.mubr.f32.mxu0 0.0
      %2257 = vmatmul.mubr.f32.gmra.mxu0 %v2051
      %v2258 = vpop.f32.mrf.mxu0
      %v2259 = vpop.f32.mrf.mxu0
      %2260 = vmatprep.mubr.f32.mxu0 0.0
      %2261 = vmatmul.mubr.f32.gmra.mxu0 %v2054
      %v2262 = vpop.f32.mrf.mxu0
      %v2263 = vpop.f32.mrf.mxu0
      %2264 = vmatprep.mubr.f32.mxu0 0.0
      %2265 = vmatmul.mubr.f32.gmra.mxu0 %v2057
      %v2266 = vpop.f32.mrf.mxu0
      %v2267 = vpop.f32.mrf.mxu0
      %2268 = vdwg.mxu0
      %2269 = vxpose.xlu0.b32.start [1/16] %v2126, 128
      %2270 = vxpose.xlu0.b32.cont [2/16] %v2132, 128
      %2271 = vxpose.xlu0.b32.cont [3/16] %v2138, 128
      %2272 = vxpose.xlu0.b32.cont [4/16] %v2144, 128
      %2273 = vxpose.xlu0.b32.cont [5/16] 0.0, 128
      %2274 = vxpose.xlu0.b32.cont [6/16] 0.0, 128
      %2275 = vxpose.xlu0.b32.cont [7/16] 0.0, 128
      %2276 = vxpose.xlu0.b32.cont [8/16] 0.0, 128
      %2277 = vxpose.xlu0.b32.cont [9/16] 0.0, 128
      %2278 = vxpose.xlu0.b32.cont [10/16] 0.0, 128
      %2279 = vxpose.xlu0.b32.cont [11/16] 0.0, 128
      %2280 = vxpose.xlu0.b32.cont [12/16] 0.0, 128
      %2281 = vxpose.xlu0.b32.cont [13/16] 0.0, 128
      %2282 = vxpose.xlu0.b32.cont [14/16] 0.0, 128
      %2283 = vxpose.xlu0.b32.cont [15/16] 0.0, 128
      %2284 = vxpose.xlu0.b32.end [16/16] 0.0, 128
      %v2285 = vpop.trf.xlu0
      %v2286 = vpop.trf.xlu0
      %v2287 = vpop.trf.xlu0
      %v2288 = vpop.trf.xlu0
      %v2289 = vpop.trf.xlu0
      %v2290 = vpop.trf.xlu0
      %v2291 = vpop.trf.xlu0
      %v2292 = vpop.trf.xlu0
      %v2293 = vpop.trf.xlu0
      %v2294 = vpop.trf.xlu0
      %v2295 = vpop.trf.xlu0
      %v2296 = vpop.trf.xlu0
      %v2297 = vpop.trf.xlu0
      %v2298 = vpop.trf.xlu0
      %v2299 = vpop.trf.xlu0
      %v2300 = vpop.trf.xlu0
      %2301 = vxpose.xlu0.b32.start [1/16] %v2128, 128
      %2302 = vxpose.xlu0.b32.cont [2/16] %v2134, 128
      %2303 = vxpose.xlu0.b32.cont [3/16] %v2140, 128
      %2304 = vxpose.xlu0.b32.cont [4/16] %v2146, 128
      %2305 = vxpose.xlu0.b32.cont [5/16] 0.0, 128
      %2306 = vxpose.xlu0.b32.cont [6/16] 0.0, 128
      %2307 = vxpose.xlu0.b32.cont [7/16] 0.0, 128
      %2308 = vxpose.xlu0.b32.cont [8/16] 0.0, 128
      %2309 = vxpose.xlu0.b32.cont [9/16] 0.0, 128
      %2310 = vxpose.xlu0.b32.cont [10/16] 0.0, 128
      %2311 = vxpose.xlu0.b32.cont [11/16] 0.0, 128
      %2312 = vxpose.xlu0.b32.cont [12/16] 0.0, 128
      %2313 = vxpose.xlu0.b32.cont [13/16] 0.0, 128
      %2314 = vxpose.xlu0.b32.cont [14/16] 0.0, 128
      %2315 = vxpose.xlu0.b32.cont [15/16] 0.0, 128
      %2316 = vxpose.xlu0.b32.end [16/16] 0.0, 128
      %v2317 = vpop.trf.xlu0
      %v2318 = vpop.trf.xlu0
      %v2319 = vpop.trf.xlu0
      %v2320 = vpop.trf.xlu0
      %v2321 = vpop.trf.xlu0
      %v2322 = vpop.trf.xlu0
      %v2323 = vpop.trf.xlu0
      %v2324 = vpop.trf.xlu0
      %v2325 = vpop.trf.xlu0
      %v2326 = vpop.trf.xlu0
      %v2327 = vpop.trf.xlu0
      %v2328 = vpop.trf.xlu0
      %v2329 = vpop.trf.xlu0
      %v2330 = vpop.trf.xlu0
      %v2331 = vpop.trf.xlu0
      %v2332 = vpop.trf.xlu0
      %2333 = vxpose.xlu0.b32.start [1/16] %v2231, 128
      %2334 = vxpose.xlu0.b32.cont [2/16] %v2237, 128
      %2335 = vxpose.xlu0.b32.cont [3/16] %v2243, 128
      %2336 = vxpose.xlu0.b32.cont [4/16] %v2249, 128
      %2337 = vxpose.xlu0.b32.cont [5/16] 0.0, 128
      %2338 = vxpose.xlu0.b32.cont [6/16] 0.0, 128
      %2339 = vxpose.xlu0.b32.cont [7/16] 0.0, 128
      %2340 = vxpose.xlu0.b32.cont [8/16] 0.0, 128
      %2341 = vxpose.xlu0.b32.cont [9/16] 0.0, 128
      %2342 = vxpose.xlu0.b32.cont [10/16] 0.0, 128
      %2343 = vxpose.xlu0.b32.cont [11/16] 0.0, 128
      %2344 = vxpose.xlu0.b32.cont [12/16] 0.0, 128
      %2345 = vxpose.xlu0.b32.cont [13/16] 0.0, 128
      %2346 = vxpose.xlu0.b32.cont [14/16] 0.0, 128
      %2347 = vxpose.xlu0.b32.cont [15/16] 0.0, 128
      %2348 = vxpose.xlu0.b32.end [16/16] 0.0, 128
      %v2349 = vpop.trf.xlu0
      %v2350 = vpop.trf.xlu0
      %v2351 = vpop.trf.xlu0
      %v2352 = vpop.trf.xlu0
      %v2353 = vpop.trf.xlu0
      %v2354 = vpop.trf.xlu0
      %v2355 = vpop.trf.xlu0
      %v2356 = vpop.trf.xlu0
      %v2357 = vpop.trf.xlu0
      %v2358 = vpop.trf.xlu0
      %v2359 = vpop.trf.xlu0
      %v2360 = vpop.trf.xlu0
      %v2361 = vpop.trf.xlu0
      %v2362 = vpop.trf.xlu0
      %v2363 = vpop.trf.xlu0
      %v2364 = vpop.trf.xlu0
      %2365 = vxpose.xlu0.b32.start [1/16] %v2233, 128
      %2366 = vxpose.xlu0.b32.cont [2/16] %v2239, 128
      %2367 = vxpose.xlu0.b32.cont [3/16] %v2245, 128
      %2368 = vxpose.xlu0.b32.cont [4/16] %v2251, 128
      %2369 = vxpose.xlu0.b32.cont [5/16] 0.0, 128
      %2370 = vxpose.xlu0.b32.cont [6/16] 0.0, 128
      %2371 = vxpose.xlu0.b32.cont [7/16] 0.0, 128
      %2372 = vxpose.xlu0.b32.cont [8/16] 0.0, 128
      %2373 = vxpose.xlu0.b32.cont [9/16] 0.0, 128
      %2374 = vxpose.xlu0.b32.cont [10/16] 0.0, 128
      %2375 = vxpose.xlu0.b32.cont [11/16] 0.0, 128
      %2376 = vxpose.xlu0.b32.cont [12/16] 0.0, 128
      %2377 = vxpose.xlu0.b32.cont [13/16] 0.0, 128
      %2378 = vxpose.xlu0.b32.cont [14/16] 0.0, 128
      %2379 = vxpose.xlu0.b32.cont [15/16] 0.0, 128
      %2380 = vxpose.xlu0.b32.end [16/16] 0.0, 128
      %v2381 = vpop.trf.xlu0
      %v2382 = vpop.trf.xlu0
      %v2383 = vpop.trf.xlu0
      %v2384 = vpop.trf.xlu0
      %v2385 = vpop.trf.xlu0
      %v2386 = vpop.trf.xlu0
      %v2387 = vpop.trf.xlu0
      %v2388 = vpop.trf.xlu0
      %v2389 = vpop.trf.xlu0
      %v2390 = vpop.trf.xlu0
      %v2391 = vpop.trf.xlu0
      %v2392 = vpop.trf.xlu0
      %v2393 = vpop.trf.xlu0
      %v2394 = vpop.trf.xlu0
      %v2395 = vpop.trf.xlu0
      %v2396 = vpop.trf.xlu0
      %vm2397 = vcmask 261120
      %2398 = vst.msk [vmem:[%s172] sm:$0xff] %vm2397, %v2285
      %2399 = vst.msk [vmem:[%s172 + $0x8] sm:$0xff] %vm2397, %v2286
      %2400 = vst.msk [vmem:[%s172 + $0x10] sm:$0xff] %vm2397, %v2287
      %2401 = vst.msk [vmem:[%s172 + $0x18] sm:$0xff] %vm2397, %v2288
      %2402 = vst.msk [vmem:[%s172 + $0x20] sm:$0xff] %vm2397, %v2289
      %2403 = vst.msk [vmem:[%s172 + $0x28] sm:$0xff] %vm2397, %v2290
      %2404 = vst.msk [vmem:[%s172 + $0x30] sm:$0xff] %vm2397, %v2291
      %2405 = vst.msk [vmem:[%s172 + $0x38] sm:$0xff] %vm2397, %v2292
      %2406 = vst.msk [vmem:[%s172 + $0x40] sm:$0xff] %vm2397, %v2293
      %2407 = vst.msk [vmem:[%s172 + $0x48] sm:$0xff] %vm2397, %v2294
      %2408 = vst.msk [vmem:[%s172 + $0x50] sm:$0xff] %vm2397, %v2295
      %2409 = vst.msk [vmem:[%s172 + $0x58] sm:$0xff] %vm2397, %v2296
      %2410 = vst.msk [vmem:[%s172 + $0x60] sm:$0xff] %vm2397, %v2297
      %2411 = vst.msk [vmem:[%s172 + $0x68] sm:$0xff] %vm2397, %v2298
      %2412 = vst.msk [vmem:[%s172 + $0x70] sm:$0xff] %vm2397, %v2299
      %2413 = vst.msk [vmem:[%s172 + $0x78] sm:$0xff] %vm2397, %v2300
      %2414 = vst.msk [vmem:[%s172 + $0x80] sm:$0xff] %vm2397, %v2317
      %2415 = vst.msk [vmem:[%s172 + $0x88] sm:$0xff] %vm2397, %v2318
      %2416 = vst.msk [vmem:[%s172 + $0x90] sm:$0xff] %vm2397, %v2319
      %2417 = vst.msk [vmem:[%s172 + $0x98] sm:$0xff] %vm2397, %v2320
      %2418 = vst.msk [vmem:[%s172 + $0xa0] sm:$0xff] %vm2397, %v2321
      %2419 = vst.msk [vmem:[%s172 + $0xa8] sm:$0xff] %vm2397, %v2322
      %2420 = vst.msk [vmem:[%s172 + $0xb0] sm:$0xff] %vm2397, %v2323
      %2421 = vst.msk [vmem:[%s172 + $0xb8] sm:$0xff] %vm2397, %v2324
      %2422 = vst.msk [vmem:[%s172 + $0xc0] sm:$0xff] %vm2397, %v2325
      %2423 = vst.msk [vmem:[%s172 + $0xc8] sm:$0xff] %vm2397, %v2326
      %2424 = vst.msk [vmem:[%s172 + $0xd0] sm:$0xff] %vm2397, %v2327
      %2425 = vst.msk [vmem:[%s172 + $0xd8] sm:$0xff] %vm2397, %v2328
      %2426 = vst.msk [vmem:[%s172 + $0xe0] sm:$0xff] %vm2397, %v2329
      %2427 = vst.msk [vmem:[%s172 + $0xe8] sm:$0xff] %vm2397, %v2330
      %2428 = vst.msk [vmem:[%s172 + $0xf0] sm:$0xff] %vm2397, %v2331
      %2429 = vst.msk [vmem:[%s172 + $0xf8] sm:$0xff] %vm2397, %v2332
      %2430 = vst.msk [vmem:[%s172 + $0x100] sm:$0xff] %vm2397, %v2349
      %2431 = vst.msk [vmem:[%s172 + $0x108] sm:$0xff] %vm2397, %v2350
      %2432 = vst.msk [vmem:[%s172 + $0x110] sm:$0xff] %vm2397, %v2351
      %2433 = vst.msk [vmem:[%s172 + $0x118] sm:$0xff] %vm2397, %v2352
      %2434 = vst.msk [vmem:[%s172 + $0x120] sm:$0xff] %vm2397, %v2353
      %2435 = vst.msk [vmem:[%s172 + $0x128] sm:$0xff] %vm2397, %v2354
      %2436 = vst.msk [vmem:[%s172 + $0x130] sm:$0xff] %vm2397, %v2355
      %2437 = vst.msk [vmem:[%s172 + $0x138] sm:$0xff] %vm2397, %v2356
      %2438 = vst.msk [vmem:[%s172 + $0x140] sm:$0xff] %vm2397, %v2357
      %2439 = vst.msk [vmem:[%s172 + $0x148] sm:$0xff] %vm2397, %v2358
      %2440 = vst.msk [vmem:[%s172 + $0x150] sm:$0xff] %vm2397, %v2359
      %2441 = vst.msk [vmem:[%s172 + $0x158] sm:$0xff] %vm2397, %v2360
      %2442 = vst.msk [vmem:[%s172 + $0x160] sm:$0xff] %vm2397, %v2361
      %2443 = vst.msk [vmem:[%s172 + $0x168] sm:$0xff] %vm2397, %v2362
      %2444 = vst.msk [vmem:[%s172 + $0x170] sm:$0xff] %vm2397, %v2363
      %2445 = vst.msk [vmem:[%s172 + $0x178] sm:$0xff] %vm2397, %v2364
      %2446 = vst.msk [vmem:[%s172 + $0x180] sm:$0xff] %vm2397, %v2381
      %2447 = vst.msk [vmem:[%s172 + $0x188] sm:$0xff] %vm2397, %v2382
      %2448 = vst.msk [vmem:[%s172 + $0x190] sm:$0xff] %vm2397, %v2383
      %2449 = vst.msk [vmem:[%s172 + $0x198] sm:$0xff] %vm2397, %v2384
      %2450 = vst.msk [vmem:[%s172 + $0x1a0] sm:$0xff] %vm2397, %v2385
      %2451 = vst.msk [vmem:[%s172 + $0x1a8] sm:$0xff] %vm2397, %v2386
      %2452 = vst.msk [vmem:[%s172 + $0x1b0] sm:$0xff] %vm2397, %v2387
      %2453 = vst.msk [vmem:[%s172 + $0x1b8] sm:$0xff] %vm2397, %v2388
      %2454 = vst.msk [vmem:[%s172 + $0x1c0] sm:$0xff] %vm2397, %v2389
      %2455 = vst.msk [vmem:[%s172 + $0x1c8] sm:$0xff] %vm2397, %v2390
      %2456 = vst.msk [vmem:[%s172 + $0x1d0] sm:$0xff] %vm2397, %v2391
      %2457 = vst.msk [vmem:[%s172 + $0x1d8] sm:$0xff] %vm2397, %v2392
      %2458 = vst.msk [vmem:[%s172 + $0x1e0] sm:$0xff] %vm2397, %v2393
      %2459 = vst.msk [vmem:[%s172 + $0x1e8] sm:$0xff] %vm2397, %v2394
      %2460 = vst.msk [vmem:[%s172 + $0x1f0] sm:$0xff] %vm2397, %v2395
      %2461 = vst.msk [vmem:[%s172 + $0x1f8] sm:$0xff] %vm2397, %v2396
      %s2462 = smul.u32 64, %s14
      %p2463 = scmp.lt.s32.totalorder %s2462, 127
      %s2464 = scalar_select %p2463, %s2462, 127
      %s2465 = smul.addr %s2464, 8
      %s2466 = scalar_lea.vmem %s3, %s2465
      // Predicated region
      $region33: #{tpu_custom_call.1} parent=31 // pred_check
        %p2467 = pneg %p100
      $region34: #{tpu_custom_call.1} parent=31 // pred_check_branch
        %2469 = sbr.rel (%p2467) target = $region36
      $region35: #{tpu_custom_call.1} parent=31 // pred_region
        %s2470 = smul.u32 64, %s14
      $region36: #{tpu_custom_call.1} parent=31 // pred_fallthru
        _
    $region32: #{tpu_custom_call.1} parent=5 // pred_fallthru
      _
    %p2471 = scmp.le.s32.totalorder 2, %s9
    // Predicated region
    $region37: #{tpu_custom_call.1} parent=5 // pred_check
      %p2472 = pneg %p2471
    $region38: #{tpu_custom_call.1} parent=5 // pred_check_branch
      %2474 = sbr.rel (%p2472) target = $region40
    $region39: #{tpu_custom_call.1} parent=5 // pred_region
      %s2475 = ssub.s32 %s9, 2
      // Predicated region
      $region41: #{tpu_custom_call.1} parent=39 // pred_check
        %p2476 = pneg %p106
      $region42: #{tpu_custom_call.1} parent=39 // pred_check_branch
        %2478 = sbr.rel (%p2476) target = $region44
      $region43: #{tpu_custom_call.1} parent=39 // pred_region
        %s2479 = smul.u32 64, %s15
        %p2480 = scmp.lt.s32.totalorder %s2479, 127
        %s2481 = scalar_select %p2480, %s2479, 127
        %s2482 = smul.addr %s2481, 8
        %s2483 = scalar_lea.vmem %s3, %s2482
      $region44: #{tpu_custom_call.1} parent=39 // pred_fallthru
        _
    $region40: #{tpu_custom_call.1} parent=5 // pred_fallthru
      _
  $region6: #{tpu_custom_call.1} parent=0 // loop_footer
    %s13 = sadd.s32 1, %s9
  $region7: #{tpu_custom_call.1} parent=0 // loop_footer_branch
    %8 = sbr.rel target = $region3
  $region8: #{tpu_custom_call.1} parent=0 // loop_exit
    _

</llo_original>
